<compile_context>
chip_gen: v6e
topology: v6e:2x2x1
jax: 0.10.0
libtpu: 0.0.40
codegen_flags: <defaults>
</compile_context>

<pallas_src>
import functools

import jax
import jax.numpy as jnp
from jax.experimental import pallas as pl
from jax.experimental.pallas import tpu as pltpu


def _round_up(v, m):
    return (v + m - 1) // m * m


def _pad2(a, rows, cols, dtype):
    """Zero-pad a 2-D array to (rows, cols) and cast."""
    return jnp.zeros((rows, cols), dtype).at[: a.shape[0], : a.shape[1]].set(a.astype(dtype))


# ----------------------------- kernel 1: reduce_x producer ------------------------------
def _reduce_kernel(x_ref, w1_ref, b1_ref, rx_ref):
    # x_ref: (1, tile, Cin) row tile of the current batch element.
    x = x_ref[0]                                                          # (tile, Cin)
    # conv_reduce: 1x1 conv (BN scale pre-folded into w1) + bias + ReLU.
    rx = jnp.dot(x, w1_ref[...], preferred_element_type=jnp.float32)     # (tile, RC_p) f32
    rx = jnp.maximum(rx + b1_ref[...], 0.0)
    rx_ref[0] = rx.astype(rx_ref.dtype)


# ------------- kernel 2: hidden conv + attention logits + softmax + bmm -----------------
def _attn_bmm_kernel(rx_ref, w2_ref, b2_ref, w3_ref, mask_ref, o_ref, *,
                     tile, use_tpu_hints):
    j = pl.program_id(1)
    row0 = j * tile
    if use_tpu_hints:
        row0 = pl.multiple_of(row0, tile)
    # Slice this step's row tile out of the resident full reduce_x block (no HBM a1 staging).
    rx_tile = rx_ref[0, pl.ds(row0, tile), :]                             # (tile, RC_p)
    # attention[0]: _ConvBNReLU(RC -> RC), BN scale folded into w2.
    a1 = jnp.dot(rx_tile, w2_ref[...], preferred_element_type=jnp.float32)
    a1 = jnp.maximum(a1 + b2_ref[...], 0.0).astype(rx_ref.dtype)          # (tile, RC_p)
    # attention[1]: Conv2d(RC -> HW, bias=False) for this row tile only; the additive mask
    # sends padded out-channel columns to -1e30 (they must get zero softmax mass because the
    # padded spatial rows of reduce_x are ReLU(b1) != 0).
    att = jnp.dot(a1, w3_ref[...], preferred_element_type=jnp.float32)    # (tile, HW_p) f32
    att = att + mask_ref[...]
    # Row softmax (== PyTorch softmax over dim=1 in this layout); normalization deferred.
    att = jnp.exp(att - jnp.max(att, axis=-1, keepdims=True))
    l = jnp.sum(att, axis=-1, keepdims=True)                              # (tile, 1)
    # bmm with the unnormalized exp, then rescale the small (tile, RC_p) result.
    fm = jnp.dot(att.astype(rx_ref.dtype), rx_ref[0],
                 preferred_element_type=jnp.float32)                      # (tile, RC_p)
    if use_tpu_hints:
        inv = pl.reciprocal(l, approx=True)                               # EUP slot
    else:
        inv = 1.0 / l
    fm = fm * inv
    # Store RC-major: lane-dense last dim; the wrapper needs no NCHW transpose of the output.
    o_ref[0] = fm.T.astype(o_ref.dtype)                                   # (RC_p, tile)


def psa_attention_generation(x_nchw, params):
    """x_nchw: (N, Cin, H, W) float32. Returns (N, RC, H, W) float32."""
    n, cin, h, w = x_nchw.shape
    hw = h * w
    rc = params["w1"].shape[1]
    assert params["w3"].shape[1] == hw, "out_channels must equal H*W for the bmm"

    f32 = jnp.float32
    on_tpu = jax.default_backend() == "tpu"
    # bf16 MXU operands on TPU; f32 elsewhere (the CPU/interpret dot runtime rejects
    # BF16 x BF16 = F32, which is what broke the previous version).
    op_dt = jnp.bfloat16 if on_tpu else jnp.float32
    wb = 2 if on_tpu else 4

    rc_p = _round_up(rc, 128)
    hw_p = _round_up(hw, 128)

    # --- VMEM budget / tile sizing (per generation: 128 MiB on v5e/v6e, 64 MiB on v7x) ---
    phys_vmem = 128 * 1024 * 1024
    if on_tpu:
        try:
            phys_vmem = pltpu.get_tpu_info().vmem_capacity_bytes
        except Exception:
            pass
    budget = int(phys_vmem * 0.75)

    def pick_tile(fixed_bytes, per_row_bytes):
        for t in (1024, 512, 256, 128):
            if t <= hw_p and hw_p % t == 0 and fixed_bytes + t * per_row_bytes <= budget:
                return t
        return 128

    # kernel 1: single-buffered w1/b1 + double-buffered x / rx row tiles + f32 intermediate.
    fixed1 = cin * rc_p * wb + 8 * rc_p * 4
    per_row1 = 2 * cin * wb + 2 * rc_p * wb + rc_p * 4
    tile1 = pick_tile(fixed1, per_row1)

    # kernel 2: resident rx + w3 + w2 (single-buffered) + per-tile f32 logits/exp slab.
    fixed2 = hw_p * rc_p * wb + rc_p * hw_p * wb + rc_p * rc_p * wb + 8 * (rc_p + hw_p) * 4
    per_row2 = 2 * hw_p * 4 + 4 * rc_p * 4 + 2 * rc_p * wb
    tile2 = pick_tile(fixed2, per_row2)

    # --- fold BN scale into conv weights at trace time, pad channel dims, cast operands ---
    w1 = params["w1"] * params["s1"][None, :]
    w2 = params["w2"] * params["s2"][None, :]
    w1p = _pad2(w1, cin, rc_p, op_dt)
    w2p = _pad2(w2, rc_p, rc_p, op_dt)
    w3p = _pad2(params["w3"], rc_p, hw_p, op_dt)
    b1p = jnp.zeros((1, rc_p), f32).at[0, :rc].set(params["b1"])
    b2p = jnp.zeros((1, rc_p), f32).at[0, :rc].set(params["b2"])
    # Additive column mask: 0 for valid attention out-channels, -1e30 for padded ones.
    mask = jnp.where(jnp.arange(hw_p) < hw, 0.0, -1e30).astype(f32)[None, :]

    # NCHW -> (N, HW_p, Cin), zero-padded rows; Cin stays unpadded (full-dim block rule).
    x_mat = jnp.transpose(x_nchw, (0, 2, 3, 1)).reshape(n, hw, cin)
    x_pad = jnp.zeros((n, hw_p, cin), op_dt).at[:, :hw, :].set(x_mat.astype(op_dt))

    def bspec(shape, index_map, *, resident=False):
        # Grid-invariant / per-batch-invariant operands: single buffer (no overlap to buy).
        if resident and on_tpu:
            return pl.BlockSpec(shape, index_map, pipeline_mode=pl.Buffered(1))
        return pl.BlockSpec(shape, index_map)

    cparams = pltpu.CompilerParams(
        dimension_semantics=("parallel", "parallel"),
        vmem_limit_bytes=budget,
    )

    # ---- kernel 1: stage reduce_x once per batch, row-tiled ----
    rx = pl.pallas_call(
        _reduce_kernel,
        out_shape=jax.ShapeDtypeStruct((n, hw_p, rc_p), op_dt),
        grid_spec=pltpu.PrefetchScalarGridSpec(
            num_scalar_prefetch=0,
            grid=(n, hw_p // tile1),
            in_specs=[
                bspec((1, tile1, cin), lambda i, j: (i, j, 0)),            # x row tile
                bspec((cin, rc_p), lambda i, j: (0, 0), resident=True),    # w1 (scale folded)
                bspec((1, rc_p), lambda i, j: (0, 0), resident=True),      # b1
            ],
            out_specs=bspec((1, tile1, rc_p), lambda i, j: (i, j, 0)),     # reduce_x
        ),
        compiler_params=cparams,
    )(x_pad, w1p, b1p)

    # ---- kernel 2: hidden conv + attention logits + softmax + bmm per row tile ----
    kernel2 = functools.partial(_attn_bmm_kernel, tile=tile2, use_tpu_hints=on_tpu)
    out_pad = pl.pallas_call(
        kernel2,
        out_shape=jax.ShapeDtypeStruct((n, rc_p, hw_p), f32),
        grid_spec=pltpu.PrefetchScalarGridSpec(
            num_scalar_prefetch=0,
            grid=(n, hw_p // tile2),
            in_specs=[
                bspec((1, hw_p, rc_p), lambda i, j: (i, 0, 0), resident=True),  # reduce_x (full)
                bspec((rc_p, rc_p), lambda i, j: (0, 0), resident=True),        # w2 (scale folded)
                bspec((1, rc_p), lambda i, j: (0, 0), resident=True),           # b2
                bspec((rc_p, hw_p), lambda i, j: (0, 0), resident=True),        # w3
                bspec((1, hw_p), lambda i, j: (0, 0), resident=True),           # additive col mask
            ],
            out_specs=bspec((1, rc_p, tile2), lambda i, j: (i, 0, j)),
        ),
        compiler_params=cparams,
    )(rx, w2p, b2p, w3p, mask)

    # (N, RC_p, HW_p) -> (N, RC, H, W): slice + reshape only, no transpose needed.
    return out_pad[:, :rc, :hw].reshape(n, rc, h, w)


def _fold_bn(gamma, beta, mean, var, eps=1e-5):
    scale = gamma / jnp.sqrt(var + eps)
    bias = beta - mean * scale
    return scale, bias


def make_params(key, in_channels, reduced_channels, out_channels):
    ks = jax.random.split(key, 10)
    f32 = jnp.float32
    # conv weights stored as (Cin, Cout): y = x @ W  with x spatial-major.
    w1 = 0.2 * jax.random.normal(ks[0], (in_channels, reduced_channels), f32)
    w2 = 0.2 * jax.random.normal(ks[1], (reduced_channels, reduced_channels), f32)
    w3 = 0.2 * jax.random.normal(ks[2], (reduced_channels, out_channels), f32)
    # BN params (eval mode), deterministic.
    g1 = 1.0 + 0.1 * jax.random.normal(ks[3], (reduced_channels,), f32)
    b1 = 0.1 * jax.random.normal(ks[4], (reduced_channels,), f32)
    m1 = 0.1 * jax.random.normal(ks[5], (reduced_channels,), f32)
    v1 = jnp.abs(jax.random.normal(ks[6], (reduced_channels,), f32)) + 0.5
    g2 = 1.0 + 0.1 * jax.random.normal(ks[7], (reduced_channels,), f32)
    b2 = 0.1 * jax.random.normal(ks[8], (reduced_channels,), f32)
    m2 = 0.1 * jax.random.normal(ks[9], (reduced_channels,), f32)
    v2 = jnp.abs(m2) * 3.0 + 0.5
    s1, bb1 = _fold_bn(g1, b1, m1, v1)
    s2, bb2 = _fold_bn(g2, b2, m2, v2)
    return {"w1": w1, "s1": s1, "b1": bb1, "w2": w2, "s2": s2, "b2": bb2, "w3": w3}


def _reference(x_nchw, params):
    """Pure-JAX f32 reference mirroring the PyTorch forward (for verification)."""
    n, cin, h, w = x_nchw.shape
    hw = h * w
    x = jnp.transpose(x_nchw, (0, 2, 3, 1)).reshape(n, hw, cin)            # (N, HW, Cin)
    s1 = params["s1"][None, None, :]; b1 = params["b1"][None, None, :]
    s2 = params["s2"][None, None, :]; b2 = params["b2"][None, None, :]
    rx = jnp.maximum(x @ params["w1"] * s1 + b1, 0.0)                       # (N, HW, RC)
    a1 = jnp.maximum(rx @ params["w2"] * s2 + b2, 0.0)
    att = a1 @ params["w3"]                                                 # (N, HW, HW_out)
    att_pt = jnp.transpose(att, (0, 2, 1))                                  # (N, C_out, HW)
    soft = jax.nn.softmax(att_pt, axis=1)                                   # softmax over dim=1
    rx_pt = jnp.transpose(rx, (0, 2, 1))                                    # (N, RC, HW)
    fm = jnp.einsum("nrk,nkj->nrj", rx_pt, soft)                            # bmm
    return fm.reshape(n, -1, h, w)


if __name__ == "__main__":
    # Small, consistent shapes: out_channels must equal H*W for the bmm to be valid.
    N, CIN, RC, H, W = 2, 8, 8, 8, 8
    HW = H * W

    key = jax.random.PRNGKey(0)
    kx, kp = jax.random.split(key)
    x = jax.random.normal(kx, (N, CIN, H, W), jnp.float32)
    params = make_params(kp, CIN, RC, HW)

    fwd = jax.jit(psa_attention_generation)
    out = jax.block_until_ready(fwd(x, params))

    ref = _reference(x, params)
    assert out.shape == (N, RC, H, W)
    # bf16 MXU operands + approx reciprocal on TPU -> relaxed tolerance vs f32 reference.
    assert jnp.allclose(out, ref, atol=3e-2, rtol=3e-2), "Pallas output mismatch vs reference"

    print("KERNEL_OK")
</pallas_src>

<mosaic_0001>
module attributes {stable_mosaic.version = 11 : i64} {
  func.func @_reduce_kernel(%arg0: i32, %arg1: i32, %arg2: memref<1x128x8xf32, #tpu.memory_space<vmem>>, %arg3: memref<8x128xf32, #tpu.memory_space<vmem>>, %arg4: memref<1x128xf32, #tpu.memory_space<vmem>>, %arg5: memref<1x128x128xf32, #tpu.memory_space<vmem>>) attributes {dimension_semantics = [#tpu.dimension_semantics<parallel>, #tpu.dimension_semantics<parallel>], iteration_bounds = array<i64: 2, 1>, scalar_prefetch = 0 : i64, scratch_operands = 0 : i64, tpu.core_type = #tpu.core_type<tc>, window_params = [{transform_indices = @transform_0, window_bounds = array<i64: 1, 128, 8>}, {pipeline_mode = #tpu.pipeline_mode<synchronous>, transform_indices = @transform_1, window_bounds = array<i64: 8, 128>}, {pipeline_mode = #tpu.pipeline_mode<synchronous>, transform_indices = @transform_2, window_bounds = array<i64: 1, 128>}, {transform_indices = @transform_3, window_bounds = array<i64: 1, 128, 128>}]} {
    %c0 = arith.constant 0 : index
    %c0_0 = arith.constant 0 : index
    %c0_1 = arith.constant 0 : index
    %0 = vector.load %arg2[%c0, %c0_0, %c0_1] : memref<1x128x8xf32, #tpu.memory_space<vmem>>, vector<1x128x8xf32>
    %1 = vector.shape_cast %0 : vector<1x128x8xf32> to vector<128x8xf32>
    %c0_2 = arith.constant 0 : index
    %c0_3 = arith.constant 0 : index
    %2 = vector.load %arg3[%c0_2, %c0_3] : memref<8x128xf32, #tpu.memory_space<vmem>>, vector<8x128xf32>
    %cst = arith.constant dense<0.000000e+00> : vector<128x128xf32>
    %3 = tpu.matmul %1, %2, %cst {dimension_numbers = #tpu.dot_dimension_numbers<[1], [0], [0], [1], [0, 0, 1, 1], [], []>} : vector<128x8xf32>, vector<8x128xf32>, vector<128x128xf32> -> vector<128x128xf32>
    %c0_4 = arith.constant 0 : index
    %c0_5 = arith.constant 0 : index
    %4 = vector.load %arg4[%c0_4, %c0_5] : memref<1x128xf32, #tpu.memory_space<vmem>>, vector<1x128xf32>
    %5 = vector.broadcast %4 : vector<1x128xf32> to vector<128x128xf32>
    %6 = arith.addf %3, %5 : vector<128x128xf32>
    %cst_6 = arith.constant 0.000000e+00 : f32
    %7 = vector.broadcast %cst_6 : f32 to vector<128x128xf32>
    %8 = arith.maximumf %6, %7 : vector<128x128xf32>
    %c0_7 = arith.constant 0 : index
    %c0_8 = arith.constant 0 : index
    %c0_9 = arith.constant 0 : index
    %9 = vector.load %arg5[%c0_7, %c0_8, %c0_9] : memref<1x128x128xf32, #tpu.memory_space<vmem>>, vector<1x128x128xf32>
    %10 = vector.shape_cast %9 : vector<1x128x128xf32> to vector<128x128xf32>
    %11 = vector.shape_cast %8 : vector<128x128xf32> to vector<1x128x128xf32>
    tpu.vector_store %arg5[%c0_7, %c0_8, %c0_9], %11 {strides = array<i32>} : memref<1x128x128xf32, #tpu.memory_space<vmem>>, vector<1x128x128xf32>,
    return
  }
  func.func @transform_0(%arg0: i32, %arg1: i32) -> (i32, i32, i32) {
    %c0_i32 = arith.constant 0 : i32
    %c0_i32_0 = arith.constant 0 : i32
    return %arg0, %arg1, %c0_i32 : i32, i32, i32
  }
  func.func @transform_1(%arg0: i32, %arg1: i32) -> (i32, i32) {
    %c0_i32 = arith.constant 0 : i32
    %c0_i32_0 = arith.constant 0 : i32
    %c0_i32_1 = arith.constant 0 : i32
    return %c0_i32, %c0_i32_0 : i32, i32
  }
  func.func @transform_2(%arg0: i32, %arg1: i32) -> (i32, i32) {
    %c0_i32 = arith.constant 0 : i32
    %c0_i32_0 = arith.constant 0 : i32
    %c0_i32_1 = arith.constant 0 : i32
    return %c0_i32, %c0_i32_0 : i32, i32
  }
  func.func @transform_3(%arg0: i32, %arg1: i32) -> (i32, i32, i32) {
    %c0_i32 = arith.constant 0 : i32
    %c0_i32_0 = arith.constant 0 : i32
    return %arg0, %arg1, %c0_i32 : i32, i32, i32
  }
}

module attributes {stable_mosaic.version = 11 : i64} {
  func.func @_attn_bmm_kernel(%arg0: i32, %arg1: i32, %arg2: memref<1x128x128xf32, #tpu.memory_space<vmem>>, %arg3: memref<128x128xf32, #tpu.memory_space<vmem>>, %arg4: memref<1x128xf32, #tpu.memory_space<vmem>>, %arg5: memref<128x128xf32, #tpu.memory_space<vmem>>, %arg6: memref<1x128xf32, #tpu.memory_space<vmem>>, %arg7: memref<1x128x128xf32, #tpu.memory_space<vmem>>) attributes {dimension_semantics = [#tpu.dimension_semantics<parallel>, #tpu.dimension_semantics<parallel>], iteration_bounds = array<i64: 2, 1>, scalar_prefetch = 0 : i64, scratch_operands = 0 : i64, tpu.core_type = #tpu.core_type<tc>, window_params = [{transform_indices = @transform_0, window_bounds = array<i64: 1, 128, 128>}, {pipeline_mode = #tpu.pipeline_mode<synchronous>, transform_indices = @transform_1, window_bounds = array<i64: 128, 128>}, {pipeline_mode = #tpu.pipeline_mode<synchronous>, transform_indices = @transform_2, window_bounds = array<i64: 1, 128>}, {pipeline_mode = #tpu.pipeline_mode<synchronous>, transform_indices = @transform_3, window_bounds = array<i64: 128, 128>}, {pipeline_mode = #tpu.pipeline_mode<synchronous>, transform_indices = @transform_4, window_bounds = array<i64: 1, 128>}, {transform_indices = @transform_5, window_bounds = array<i64: 1, 128, 128>}]} {
    %c128_i32 = arith.constant 128 : i32
    %0 = arith.muli %arg1, %c128_i32 : i32
    %c0 = arith.constant 0 : index
    %1 = arith.index_cast %0 : i32 to index
    %c0_0 = arith.constant 0 : index
    %2 = vector.load %arg2[%c0, %1, %c0_0] : memref<1x128x128xf32, #tpu.memory_space<vmem>>, vector<1x128x128xf32>
    %3 = vector.shape_cast %2 : vector<1x128x128xf32> to vector<128x128xf32>
    %c0_1 = arith.constant 0 : index
    %c0_2 = arith.constant 0 : index
    %4 = vector.load %arg3[%c0_1, %c0_2] : memref<128x128xf32, #tpu.memory_space<vmem>>, vector<128x128xf32>
    %cst = arith.constant dense<0.000000e+00> : vector<128x128xf32>
    %5 = tpu.matmul %3, %4, %cst {dimension_numbers = #tpu.dot_dimension_numbers<[1], [0], [0], [1], [0, 0, 1, 1], [], []>} : vector<128x128xf32>, vector<128x128xf32>, vector<128x128xf32> -> vector<128x128xf32>
    %c0_3 = arith.constant 0 : index
    %c0_4 = arith.constant 0 : index
    %6 = vector.load %arg4[%c0_3, %c0_4] : memref<1x128xf32, #tpu.memory_space<vmem>>, vector<1x128xf32>
    %7 = vector.broadcast %6 : vector<1x128xf32> to vector<128x128xf32>
    %8 = arith.addf %5, %7 : vector<128x128xf32>
    %cst_5 = arith.constant 0.000000e+00 : f32
    %9 = vector.broadcast %cst_5 : f32 to vector<128x128xf32>
    %10 = arith.maximumf %8, %9 : vector<128x128xf32>
    %c0_6 = arith.constant 0 : index
    %c0_7 = arith.constant 0 : index
    %11 = vector.load %arg5[%c0_6, %c0_7] : memref<128x128xf32, #tpu.memory_space<vmem>>, vector<128x128xf32>
    %cst_8 = arith.constant dense<0.000000e+00> : vector<128x128xf32>
    %12 = tpu.matmul %10, %11, %cst_8 {dimension_numbers = #tpu.dot_dimension_numbers<[1], [0], [0], [1], [0, 0, 1, 1], [], []>} : vector<128x128xf32>, vector<128x128xf32>, vector<128x128xf32> -> vector<128x128xf32>
    %c0_9 = arith.constant 0 : index
    %c0_10 = arith.constant 0 : index
    %13 = vector.load %arg6[%c0_9, %c0_10] : memref<1x128xf32, #tpu.memory_space<vmem>>, vector<1x128xf32>
    %14 = vector.broadcast %13 : vector<1x128xf32> to vector<128x128xf32>
    %15 = arith.addf %12, %14 : vector<128x128xf32>
    %cst_11 = arith.constant dense<0xFF800000> : vector<128xf32>
    %16 = vector.multi_reduction <maximumf>, %15, %cst_11 [1] : vector<128x128xf32> to vector<128xf32>
    %17 = vector.shape_cast %16 : vector<128xf32> to vector<128x1xf32>
    %18 = vector.broadcast %17 : vector<128x1xf32> to vector<128x128xf32>
    %19 = arith.subf %15, %18 : vector<128x128xf32>
    %20 = math.exp %19 : vector<128x128xf32>
    %cst_12 = arith.constant dense<0.000000e+00> : vector<128xf32>
    %21 = vector.multi_reduction <add>, %20, %cst_12 [1] : vector<128x128xf32> to vector<128xf32>
    %22 = vector.shape_cast %21 : vector<128xf32> to vector<128x1xf32>
    %c0_13 = arith.constant 0 : index
    %c0_14 = arith.constant 0 : index
    %c0_15 = arith.constant 0 : index
    %23 = vector.load %arg2[%c0_13, %c0_14, %c0_15] : memref<1x128x128xf32, #tpu.memory_space<vmem>>, vector<1x128x128xf32>
    %24 = vector.shape_cast %23 : vector<1x128x128xf32> to vector<128x128xf32>
    %cst_16 = arith.constant dense<0.000000e+00> : vector<128x128xf32>
    %25 = tpu.matmul %20, %24, %cst_16 {dimension_numbers = #tpu.dot_dimension_numbers<[1], [0], [0], [1], [0, 0, 1, 1], [], []>} : vector<128x128xf32>, vector<128x128xf32>, vector<128x128xf32> -> vector<128x128xf32>
    %cst_17 = arith.constant 1.000000e+00 : f32
    %26 = vector.broadcast %cst_17 : f32 to vector<128x1xf32>
    %27 = arith.divf %26, %22 : vector<128x1xf32>
    %28 = vector.broadcast %27 : vector<128x1xf32> to vector<128x128xf32>
    %29 = arith.mulf %25, %28 : vector<128x128xf32>
    %30 = tpu.transpose %29, [1, 0] : vector<128x128xf32> -> vector<128x128xf32>
    %c0_18 = arith.constant 0 : index
    %c0_19 = arith.constant 0 : index
    %c0_20 = arith.constant 0 : index
    %31 = vector.load %arg7[%c0_18, %c0_19, %c0_20] : memref<1x128x128xf32, #tpu.memory_space<vmem>>, vector<1x128x128xf32>
    %32 = vector.shape_cast %31 : vector<1x128x128xf32> to vector<128x128xf32>
    %33 = vector.shape_cast %30 : vector<128x128xf32> to vector<1x128x128xf32>
    tpu.vector_store %arg7[%c0_18, %c0_19, %c0_20], %33 {strides = array<i32>} : memref<1x128x128xf32, #tpu.memory_space<vmem>>, vector<1x128x128xf32>,
    return
  }
  func.func @transform_0(%arg0: i32, %arg1: i32) -> (i32, i32, i32) {
    %c0_i32 = arith.constant 0 : i32
    %c0_i32_0 = arith.constant 0 : i32
    %c0_i32_1 = arith.constant 0 : i32
    return %arg0, %c0_i32, %c0_i32_0 : i32, i32, i32
  }
  func.func @transform_1(%arg0: i32, %arg1: i32) -> (i32, i32) {
    %c0_i32 = arith.constant 0 : i32
    %c0_i32_0 = arith.constant 0 : i32
    %c0_i32_1 = arith.constant 0 : i32
    return %c0_i32, %c0_i32_0 : i32, i32
  }
  func.func @transform_2(%arg0: i32, %arg1: i32) -> (i32, i32) {
    %c0_i32 = arith.constant 0 : i32
    %c0_i32_0 = arith.constant 0 : i32
    %c0_i32_1 = arith.constant 0 : i32
    return %c0_i32, %c0_i32_0 : i32, i32
  }
  func.func @transform_3(%arg0: i32, %arg1: i32) -> (i32, i32) {
    %c0_i32 = arith.constant 0 : i32
    %c0_i32_0 = arith.constant 0 : i32
    %c0_i32_1 = arith.constant 0 : i32
    return %c0_i32, %c0_i32_0 : i32, i32
  }
  func.func @transform_4(%arg0: i32, %arg1: i32) -> (i32, i32) {
    %c0_i32 = arith.constant 0 : i32
    %c0_i32_0 = arith.constant 0 : i32
    %c0_i32_1 = arith.constant 0 : i32
    return %c0_i32, %c0_i32_0 : i32, i32
  }
  func.func @transform_5(%arg0: i32, %arg1: i32) -> (i32, i32, i32) {
    %c0_i32 = arith.constant 0 : i32
    %c0_i32_0 = arith.constant 0 : i32
    return %arg0, %c0_i32, %arg1 : i32, i32, i32
  }
}

</mosaic_0001>

<llo_original>
// kernel: psa_attention_generation.2
$region0: #{psa_attention_generation.2}
  #allocation0 [shape = 'u32[]', space=smem, size = 0x4, offset = 0x4, fixed_abs, tag = 'smem constant byte address 0x4 - core index']
  #allocation1 [shape = 'u32[144,128]{1,0:T(1,128)}', space=vmem, size = 0x12000, scoped, tag = 'internal scratch']
  %s0 = inlined_call_operand.vmem [shape: f32[2,128,8], index: 0, kind: input, shape index: {}]
  %s1 = inlined_call_operand.vmem [shape: f32[8,128], index: 1, kind: input, shape index: {}]
  %s2 = inlined_call_operand.vmem [shape: f32[1,128], index: 2, kind: input, shape index: {}]
  %s3 = inlined_call_operand.vmem [shape: f32[2,128,128], index: 3, kind: output, shape index: {}]
  %s4 = sld [smem:[#allocation0]]
  $region45: #{psa_attention_generation.2} parent=0
    _
  %s6 = ssub.s32 1, %s4
  %s7 = scalar_select 0, %s6, %s4
  loop: start=0, step=1, limit=4
  $region2: #{psa_attention_generation.2} parent=0 // loop_pre_header
    _
  $region3: #{psa_attention_generation.2} parent=0 // loop_header
    %s9 = sphi 0, %s13
    %p10 = scmp.ge.s32.totalorder %s9, 4
    %s16 = sphi 0, %s28
    %s17 = sphi 0, %s24
    %s18 = sphi 0, %s16
    %s19 = sphi 0, %s17
    %s20 = sphi 0, %s18
    %s21 = sphi 0, %s19
    %s33 = sphi 0, %s35
    %s36 = sphi 0, %s33
    %s37 = sphi 0, %s36
    %s53 = sphi 0, %s37
    %s57 = sphi 0, %s57
    %s59 = sphi 0, %s57
    %s60 = sphi 0, %s59
    %s74 = sphi 0, %s60
    %s78 = sphi 0, %s78
    %s80 = sphi 0, %s78
    %s81 = sphi 0, %s80
    %s95 = sphi 0, %s81
    %s103 = sphi 0, %s105
    %s106 = sphi 0, %s103
    %s107 = sphi 0, %s106
    %s123 = sphi 0, %s107
  $region4: #{psa_attention_generation.2} parent=0 // loop_header_branch
    %12 = sbr.rel (%p10) target = $region8
  $region5: #{psa_attention_generation.2} parent=0 // loop_body
    %s14 = ssub.s32 %s9, 1
    %s15 = ssub.s32 %s9, 2
    %s22 = sadd.s32 1, %s17
    %p23 = scmp.ge.s32.totalorder %s22, 1
    %s24 = scalar_select %p23, 0, %s22
    %s25 = sadd.s32 1, %s16
    %s26 = scalar_select %p23, %s25, %s16
    %p27 = scmp.ge.s32.totalorder %s26, 2
    %s28 = scalar_select %p27, 0, %s26
    %s29 = ssub.s32 %s16, %s28
    %s30 = ssub.s32 %s17, %s24
    %s31 = sor.u32 %s29, %s30
    %p32 = scmp.eq.s32.totalorder %s31, 0
    %s34 = sadd.s32 %s33, 1
    %s35 = scalar_select %p32, %s33, %s34
    %p38 = pneg %p32
    %p39 = scmp.eq.s32.totalorder %s9, 1
    %p40 = por %p38, %p39
    %p41 = scmp.ne.s32.totalorder %s33, %s36
    %p42 = scmp.eq.s32.totalorder %s9, 0
    %p43 = por %p41, %p42
    %p44 = scmp.ne.s32.totalorder %s33, %s36
    %p45 = scmp.eq.s32.totalorder %s14, 1
    %p46 = por %p44, %p45
    %p47 = scmp.ne.s32.totalorder %s36, %s37
    %p48 = scmp.eq.s32.totalorder %s14, 0
    %p49 = por %p47, %p48
    %p50 = scmp.ne.s32.totalorder %s36, %s37
    %p51 = scmp.eq.s32.totalorder %s15, 1
    %p52 = por %p50, %p51
    %p54 = scmp.ne.s32.totalorder %s37, %s53
    %p55 = scmp.eq.s32.totalorder %s15, 0
    %p56 = por %p54, %p55
    %s58 = sadd.s32 %s57, 1
    %p61 = scmp.eq.s32.totalorder %s9, 1
    %p62 = scmp.ne.s32.totalorder %s57, %s59
    %p63 = scmp.eq.s32.totalorder %s9, 0
    %p64 = por %p62, %p63
    %p65 = scmp.ne.s32.totalorder %s57, %s59
    %p66 = scmp.eq.s32.totalorder %s14, 1
    %p67 = por %p65, %p66
    %p68 = scmp.ne.s32.totalorder %s59, %s60
    %p69 = scmp.eq.s32.totalorder %s14, 0
    %p70 = por %p68, %p69
    %p71 = scmp.ne.s32.totalorder %s59, %s60
    %p72 = scmp.eq.s32.totalorder %s15, 1
    %p73 = por %p71, %p72
    %p75 = scmp.ne.s32.totalorder %s60, %s74
    %p76 = scmp.eq.s32.totalorder %s15, 0
    %p77 = por %p75, %p76
    %s79 = sadd.s32 %s78, 1
    %p82 = scmp.eq.s32.totalorder %s9, 1
    %p83 = scmp.ne.s32.totalorder %s78, %s80
    %p84 = scmp.eq.s32.totalorder %s9, 0
    %p85 = por %p83, %p84
    %p86 = scmp.ne.s32.totalorder %s78, %s80
    %p87 = scmp.eq.s32.totalorder %s14, 1
    %p88 = por %p86, %p87
    %p89 = scmp.ne.s32.totalorder %s80, %s81
    %p90 = scmp.eq.s32.totalorder %s14, 0
    %p91 = por %p89, %p90
    %p92 = scmp.ne.s32.totalorder %s80, %s81
    %p93 = scmp.eq.s32.totalorder %s15, 1
    %p94 = por %p92, %p93
    %p96 = scmp.ne.s32.totalorder %s81, %s95
    %p97 = scmp.eq.s32.totalorder %s15, 0
    %p98 = por %p96, %p97
    %s99 = ssub.s32 %s16, %s28
    %s100 = ssub.s32 %s17, %s24
    %s101 = sor.u32 %s99, %s100
    %p102 = scmp.eq.s32.totalorder %s101, 0
    %s104 = sadd.s32 %s103, 1
    %s105 = scalar_select %p102, %s103, %s104
    %p108 = pneg %p102
    %p109 = scmp.eq.s32.totalorder %s9, 1
    %p110 = por %p108, %p109
    %p111 = scmp.ne.s32.totalorder %s103, %s106
    %p112 = scmp.eq.s32.totalorder %s9, 0
    %p113 = por %p111, %p112
    %p114 = scmp.ne.s32.totalorder %s103, %s106
    %p115 = scmp.eq.s32.totalorder %s14, 1
    %p116 = por %p114, %p115
    %p117 = scmp.ne.s32.totalorder %s106, %s107
    %p118 = scmp.eq.s32.totalorder %s14, 0
    %p119 = por %p117, %p118
    %p120 = scmp.ne.s32.totalorder %s106, %s107
    %p121 = scmp.eq.s32.totalorder %s15, 1
    %p122 = por %p120, %p121
    %p124 = scmp.ne.s32.totalorder %s107, %s123
    %p125 = scmp.eq.s32.totalorder %s15, 0
    %p126 = por %p124, %p125
    %p127 = scmp.le.s32.totalorder 1, %s9
    %p128 = scmp.lt.s32.totalorder %s9, 3
    %p129 = pnand %p127, %p128
    %p130 = pneg %p129
    // Predicated region
    $region9: #{psa_attention_generation.2} parent=5 // pred_check
      _
    $region10: #{psa_attention_generation.2} parent=5 // pred_check_branch
      %132 = sbr.rel (%p129) target = $region12
    $region11: #{psa_attention_generation.2} parent=5 // pred_region
      %s133 = ssub.s32 %s9, 1
      // Predicated region
      $region13: #{psa_attention_generation.2} parent=11 // pred_check
        %p134 = pneg %p70
      $region14: #{psa_attention_generation.2} parent=11 // pred_check_branch
        %136 = sbr.rel (%p134) target = $region16
      $region15: #{psa_attention_generation.2} parent=11 // pred_region
        _
      $region16: #{psa_attention_generation.2} parent=11 // pred_fallthru
        _
      // Predicated region
      $region17: #{psa_attention_generation.2} parent=11 // pred_check
        %p137 = pneg %p91
      $region18: #{psa_attention_generation.2} parent=11 // pred_check_branch
        %139 = sbr.rel (%p137) target = $region20
      $region19: #{psa_attention_generation.2} parent=11 // pred_region
        _
      $region20: #{psa_attention_generation.2} parent=11 // pred_fallthru
        _
    $region12: #{psa_attention_generation.2} parent=5 // pred_fallthru
      _
    %p140 = scmp.lt.s32.totalorder %s9, 2
    // Predicated region
    $region21: #{psa_attention_generation.2} parent=5 // pred_check
      %p141 = pneg %p140
    $region22: #{psa_attention_generation.2} parent=5 // pred_check_branch
      %143 = sbr.rel (%p141) target = $region24
    $region23: #{psa_attention_generation.2} parent=5 // pred_region
      // Predicated region
      $region25: #{psa_attention_generation.2} parent=23 // pred_check
        %p144 = pneg %p43
      $region26: #{psa_attention_generation.2} parent=23 // pred_check_branch
        %146 = sbr.rel (%p144) target = $region28
      $region27: #{psa_attention_generation.2} parent=23 // pred_region
        %s147 = smul.u32 16, %s17
        %p148 = scmp.lt.s32.totalorder %s16, 1
        %s149 = scalar_select %p148, %s16, 1
        %p150 = scmp.lt.s32.totalorder %s147, 15
        %s151 = scalar_select %p150, %s147, 15
        %s152 = smul.addr %s149, 16
        %s153 = sadd.s32 %s151, %s152
        %s154 = smul.addr %s153, 8
        %s155 = scalar_lea.vmem %s0, %s154
        %s156 = smul.u32 16, %s17
      $region28: #{psa_attention_generation.2} parent=23 // pred_fallthru
        _
    $region24: #{psa_attention_generation.2} parent=5 // pred_fallthru
      _
    %p157 = scmp.le.s32.totalorder 1, %s9
    %p158 = scmp.lt.s32.totalorder %s9, 3
    %p159 = pnand %p157, %p158
    %p160 = pneg %p159
    // Predicated region
    $region29: #{psa_attention_generation.2} parent=5 // pred_check
      _
    $region30: #{psa_attention_generation.2} parent=5 // pred_check_branch
      %162 = sbr.rel (%p159) target = $region32
    $region31: #{psa_attention_generation.2} parent=5 // pred_region
      %s163 = ssub.s32 %s9, 1
      %s164 = smul.u32 16, %s19
      %p165 = scmp.lt.s32.totalorder %s18, 1
      %s166 = scalar_select %p165, %s18, 1
      %p167 = scmp.lt.s32.totalorder %s164, 15
      %s168 = scalar_select %p167, %s164, 15
      %s169 = smul.addr %s166, 16
      %s170 = sadd.s32 %s168, %s169
      %s171 = smul.addr %s170, 8
      %s172 = scalar_lea.vmem %s0, %s171
      %p173 = pneg %p49
      %p174 = pneg %p46
      %p175 = pneg %p70
      %p176 = pneg %p67
      %p177 = pneg %p91
      %p178 = pneg %p88
      %p179 = pneg %p119
      %p180 = pneg %p116
      %s181 = smul.u32 16, %s19
      %p182 = scmp.lt.s32.totalorder %s18, 1
      %s183 = scalar_select %p182, %s18, 1
      %p184 = scmp.lt.s32.totalorder %s181, 15
      %s185 = scalar_select %p184, %s181, 15
      %s186 = smul.addr %s183, 16
      %s187 = sadd.s32 %s185, %s186
      %s188 = smul.addr %s187, 8
      %s189 = scalar_lea.vmem %s3, %s188
      %s190 = smul.u32 16, %s19
      %p191 = scmp.lt.s32.totalorder %s18, 1
      %s192 = scalar_select %p191, %s18, 1
      %p193 = scmp.lt.s32.totalorder %s190, 15
      %s194 = scalar_select %p193, %s190, 15
      %s195 = smul.addr %s192, 16
      %s196 = sadd.s32 %s194, %s195
      %s197 = smul.addr %s196, 8
      %s198 = scalar_lea.vmem %s0, %s197
      %s199 = smul.u32 16, %s19
      %s200 = smul.u32 16, %s19
      %p201 = scmp.lt.s32.totalorder %s18, 1
      %s202 = scalar_select %p201, %s18, 1
      %p203 = scmp.lt.s32.totalorder %s200, 15
      %s204 = scalar_select %p203, %s200, 15
      %s205 = smul.addr %s202, 16
      %s206 = sadd.s32 %s204, %s205
      %s207 = smul.addr %s206, 8
      %s208 = scalar_lea.vmem %s3, %s207
      %s209 = smul.u32 16, %s19
      %v210 = vld [vmem:[%s198] sm:$0xff]
      %v211 = vld [vmem:[%s198 + $0x8] sm:$0xff]
      %v212 = vld [vmem:[%s198 + $0x10] sm:$0xff]
      %v213 = vld [vmem:[%s198 + $0x18] sm:$0xff]
      %v214 = vld [vmem:[%s198 + $0x20] sm:$0xff]
      %v215 = vld [vmem:[%s198 + $0x28] sm:$0xff]
      %v216 = vld [vmem:[%s198 + $0x30] sm:$0xff]
      %v217 = vld [vmem:[%s198 + $0x38] sm:$0xff]
      %v218 = vld [vmem:[%s198 + $0x40] sm:$0xff]
      %v219 = vld [vmem:[%s198 + $0x48] sm:$0xff]
      %v220 = vld [vmem:[%s198 + $0x50] sm:$0xff]
      %v221 = vld [vmem:[%s198 + $0x58] sm:$0xff]
      %v222 = vld [vmem:[%s198 + $0x60] sm:$0xff]
      %v223 = vld [vmem:[%s198 + $0x68] sm:$0xff]
      %v224 = vld [vmem:[%s198 + $0x70] sm:$0xff]
      %v225 = vld [vmem:[%s198 + $0x78] sm:$0xff]
      %v226 = vld [vmem:[%s1] sm:$0xff]
      %v227 = vld [vmem:[%s2] sm:$0x1]
      %v229 = vlaneseq
      %v230 = vshrl.u32 %v229, 7
      %v231 = vsub.s32 0, %v230
      %v232 = vrot.slane %v227, %v231
      %vm234 = vcmask 64512
      %v236 = vsel %vm234, %v210, 0
      %v239 = vsel %vm234, %v211, 0
      %v242 = vsel %vm234, %v212, 0
      %v245 = vsel %vm234, %v213, 0
      %v248 = vsel %vm234, %v214, 0
      %v251 = vsel %vm234, %v215, 0
      %v254 = vsel %vm234, %v216, 0
      %v257 = vsel %vm234, %v217, 0
      %v260 = vsel %vm234, %v218, 0
      %v263 = vsel %vm234, %v219, 0
      %v266 = vsel %vm234, %v220, 0
      %v269 = vsel %vm234, %v221, 0
      %v272 = vsel %vm234, %v222, 0
      %v275 = vsel %vm234, %v223, 0
      %v278 = vsel %vm234, %v224, 0
      %v281 = vsel %vm234, %v225, 0
      %283 = vmatprep.subr.mxu0 0.0
      %284 = vmatpush1.msra.mxu0 0.0
      %285 = vmatprep.subr.mxu0 0.0
      %286 = vmatpush1.msra.mxu0 0.0
      %287 = vmatprep.subr.mxu0 0.0
      %288 = vmatpush1.msra.mxu0 0.0
      %289 = vmatprep.subr.mxu0 0.0
      %290 = vmatpush1.msra.mxu0 0.0
      %291 = vmatprep.subr.mxu0 0.0
      %292 = vmatpush1.msra.mxu0 0.0
      %293 = vmatprep.subr.mxu0 0.0
      %294 = vmatpush1.msra.mxu0 0.0
      %295 = vmatprep.subr.mxu0 0.0
      %296 = vmatpush1.msra.mxu0 0.0
      %297 = vmatprep.subr.mxu0 0.0
      %298 = vmatpush1.msra.mxu0 0.0
      %299 = vmatprep.subr.mxu0 0.0
      %300 = vmatpush1.msra.mxu0 0.0
      %301 = vmatprep.subr.mxu0 0.0
      %302 = vmatpush1.msra.mxu0 0.0
      %303 = vmatprep.subr.mxu0 0.0
      %304 = vmatpush1.msra.mxu0 0.0
      %305 = vmatprep.subr.mxu0 0.0
      %306 = vmatpush1.msra.mxu0 0.0
      %307 = vmatprep.subr.mxu0 0.0
      %308 = vmatpush1.msra.mxu0 0.0
      %309 = vmatprep.subr.mxu0 0.0
      %310 = vmatpush1.msra.mxu0 0.0
      %311 = vmatprep.subr.mxu0 0.0
      %312 = vmatpush1.msra.mxu0 0.0
      %313 = vmatprep.subr.mxu0 0.0
      %314 = vmatpush1.msra.mxu0 %v226
      %315 = vmatprep.subr.mxu0 0.0
      %316 = vmatpush2.msra.mxu0 0.0
      %317 = vmatprep.subr.mxu0 0.0
      %318 = vmatpush2.msra.mxu0 0.0
      %319 = vmatprep.subr.mxu0 0.0
      %320 = vmatpush2.msra.mxu0 0.0
      %321 = vmatprep.subr.mxu0 0.0
      %322 = vmatpush2.msra.mxu0 0.0
      %323 = vmatprep.subr.mxu0 0.0
      %324 = vmatpush2.msra.mxu0 0.0
      %325 = vmatprep.subr.mxu0 0.0
      %326 = vmatpush2.msra.mxu0 0.0
      %327 = vmatprep.subr.mxu0 0.0
      %328 = vmatpush2.msra.mxu0 0.0
      %329 = vmatprep.subr.mxu0 0.0
      %330 = vmatpush2.msra.mxu0 0.0
      %331 = vmatprep.subr.mxu0 0.0
      %332 = vmatpush2.msra.mxu0 0.0
      %333 = vmatprep.subr.mxu0 0.0
      %334 = vmatpush2.msra.mxu0 0.0
      %335 = vmatprep.subr.mxu0 0.0
      %336 = vmatpush2.msra.mxu0 0.0
      %337 = vmatprep.subr.mxu0 0.0
      %338 = vmatpush2.msra.mxu0 0.0
      %339 = vmatprep.subr.mxu0 0.0
      %340 = vmatpush2.msra.mxu0 0.0
      %341 = vmatprep.subr.mxu0 0.0
      %342 = vmatpush2.msra.mxu0 0.0
      %343 = vmatprep.subr.mxu0 0.0
      %344 = vmatpush2.msra.mxu0 0.0
      %345 = vmatprep.subr.mxu0 0.0
      %346 = vmatpush2.msra.mxu0 0.0
      %347 = vmatprep.mubr.f32.mxu0 0.0
      %348 = vmatmul.mubr.f32.gmra.mxu0 %v236
      %v349 = vpop.f32.mrf.mxu0
      %v350 = vadd.f32 %v232, %v349
      %v351 = vpop.f32.mrf.mxu0
      %352 = vmatprep.mubr.f32.mxu0 0.0
      %353 = vmatmul.mubr.f32.gmra.mxu0 %v239
      %v354 = vpop.f32.mrf.mxu0
      %v355 = vadd.f32 %v232, %v354
      %v356 = vpop.f32.mrf.mxu0
      %357 = vmatprep.mubr.f32.mxu0 0.0
      %358 = vmatmul.mubr.f32.gmra.mxu0 %v242
      %v359 = vpop.f32.mrf.mxu0
      %v360 = vadd.f32 %v232, %v359
      %v361 = vpop.f32.mrf.mxu0
      %362 = vmatprep.mubr.f32.mxu0 0.0
      %363 = vmatmul.mubr.f32.gmra.mxu0 %v245
      %v364 = vpop.f32.mrf.mxu0
      %v365 = vadd.f32 %v232, %v364
      %v366 = vpop.f32.mrf.mxu0
      %367 = vmatprep.mubr.f32.mxu0 0.0
      %368 = vmatmul.mubr.f32.gmra.mxu0 %v248
      %v369 = vpop.f32.mrf.mxu0
      %v370 = vadd.f32 %v232, %v369
      %v371 = vpop.f32.mrf.mxu0
      %372 = vmatprep.mubr.f32.mxu0 0.0
      %373 = vmatmul.mubr.f32.gmra.mxu0 %v251
      %v374 = vpop.f32.mrf.mxu0
      %v375 = vadd.f32 %v232, %v374
      %v376 = vpop.f32.mrf.mxu0
      %377 = vmatprep.mubr.f32.mxu0 0.0
      %378 = vmatmul.mubr.f32.gmra.mxu0 %v254
      %v379 = vpop.f32.mrf.mxu0
      %v380 = vadd.f32 %v232, %v379
      %v381 = vpop.f32.mrf.mxu0
      %382 = vmatprep.mubr.f32.mxu0 0.0
      %383 = vmatmul.mubr.f32.gmra.mxu0 %v257
      %v384 = vpop.f32.mrf.mxu0
      %v385 = vadd.f32 %v232, %v384
      %v386 = vpop.f32.mrf.mxu0
      %387 = vmatprep.mubr.f32.mxu0 0.0
      %388 = vmatmul.mubr.f32.gmra.mxu0 %v260
      %v389 = vpop.f32.mrf.mxu0
      %v390 = vadd.f32 %v232, %v389
      %v391 = vpop.f32.mrf.mxu0
      %392 = vmatprep.mubr.f32.mxu0 0.0
      %393 = vmatmul.mubr.f32.gmra.mxu0 %v263
      %v394 = vpop.f32.mrf.mxu0
      %v395 = vadd.f32 %v232, %v394
      %v396 = vpop.f32.mrf.mxu0
      %397 = vmatprep.mubr.f32.mxu0 0.0
      %398 = vmatmul.mubr.f32.gmra.mxu0 %v266
      %v399 = vpop.f32.mrf.mxu0
      %v400 = vadd.f32 %v232, %v399
      %v401 = vpop.f32.mrf.mxu0
      %402 = vmatprep.mubr.f32.mxu0 0.0
      %403 = vmatmul.mubr.f32.gmra.mxu0 %v269
      %v404 = vpop.f32.mrf.mxu0
      %v405 = vadd.f32 %v232, %v404
      %v406 = vpop.f32.mrf.mxu0
      %407 = vmatprep.mubr.f32.mxu0 0.0
      %408 = vmatmul.mubr.f32.gmra.mxu0 %v272
      %v409 = vpop.f32.mrf.mxu0
      %v410 = vadd.f32 %v232, %v409
      %v411 = vpop.f32.mrf.mxu0
      %412 = vmatprep.mubr.f32.mxu0 0.0
      %413 = vmatmul.mubr.f32.gmra.mxu0 %v275
      %v414 = vpop.f32.mrf.mxu0
      %v415 = vadd.f32 %v232, %v414
      %v416 = vpop.f32.mrf.mxu0
      %417 = vmatprep.mubr.f32.mxu0 0.0
      %418 = vmatmul.mubr.f32.gmra.mxu0 %v278
      %v419 = vpop.f32.mrf.mxu0
      %v420 = vadd.f32 %v232, %v419
      %v421 = vpop.f32.mrf.mxu0
      %422 = vmatprep.mubr.f32.mxu0 0.0
      %423 = vmatmul.mubr.f32.gmra.mxu0 %v281
      %v424 = vpop.f32.mrf.mxu0
      %v425 = vadd.f32 %v232, %v424
      %v426 = vpop.f32.mrf.mxu0
      %427 = vdwg.mxu0
      %v428 = vmax.f32 %v350, 0.0
      %v429 = vmax.f32 %v355, 0.0
      %v430 = vmax.f32 %v360, 0.0
      %v431 = vmax.f32 %v365, 0.0
      %v432 = vmax.f32 %v370, 0.0
      %v433 = vmax.f32 %v375, 0.0
      %v434 = vmax.f32 %v380, 0.0
      %v435 = vmax.f32 %v385, 0.0
      %v436 = vmax.f32 %v390, 0.0
      %v437 = vmax.f32 %v395, 0.0
      %v438 = vmax.f32 %v400, 0.0
      %v439 = vmax.f32 %v405, 0.0
      %v440 = vmax.f32 %v410, 0.0
      %v441 = vmax.f32 %v415, 0.0
      %v442 = vmax.f32 %v420, 0.0
      %v443 = vmax.f32 %v425, 0.0
      %444 = vst [vmem:[%s208] sm:$0xff] %v428
      %445 = vst [vmem:[%s208 + $0x8] sm:$0xff] %v429
      %446 = vst [vmem:[%s208 + $0x10] sm:$0xff] %v430
      %447 = vst [vmem:[%s208 + $0x18] sm:$0xff] %v431
      %448 = vst [vmem:[%s208 + $0x20] sm:$0xff] %v432
      %449 = vst [vmem:[%s208 + $0x28] sm:$0xff] %v433
      %450 = vst [vmem:[%s208 + $0x30] sm:$0xff] %v434
      %451 = vst [vmem:[%s208 + $0x38] sm:$0xff] %v435
      %452 = vst [vmem:[%s208 + $0x40] sm:$0xff] %v436
      %453 = vst [vmem:[%s208 + $0x48] sm:$0xff] %v437
      %454 = vst [vmem:[%s208 + $0x50] sm:$0xff] %v438
      %455 = vst [vmem:[%s208 + $0x58] sm:$0xff] %v439
      %456 = vst [vmem:[%s208 + $0x60] sm:$0xff] %v440
      %457 = vst [vmem:[%s208 + $0x68] sm:$0xff] %v441
      %458 = vst [vmem:[%s208 + $0x70] sm:$0xff] %v442
      %459 = vst [vmem:[%s208 + $0x78] sm:$0xff] %v443
      %s460 = smul.u32 16, %s19
      %p461 = scmp.lt.s32.totalorder %s18, 1
      %s462 = scalar_select %p461, %s18, 1
      %p463 = scmp.lt.s32.totalorder %s460, 15
      %s464 = scalar_select %p463, %s460, 15
      %s465 = smul.addr %s462, 16
      %s466 = sadd.s32 %s464, %s465
      %s467 = smul.addr %s466, 8
      %s468 = scalar_lea.vmem %s3, %s467
      // Predicated region
      $region33: #{psa_attention_generation.2} parent=31 // pred_check
        %p469 = pneg %p116
      $region34: #{psa_attention_generation.2} parent=31 // pred_check_branch
        %471 = sbr.rel (%p469) target = $region36
      $region35: #{psa_attention_generation.2} parent=31 // pred_region
        %s472 = smul.u32 16, %s19
      $region36: #{psa_attention_generation.2} parent=31 // pred_fallthru
        _
    $region32: #{psa_attention_generation.2} parent=5 // pred_fallthru
      _
    %p473 = scmp.le.s32.totalorder 2, %s9
    // Predicated region
    $region37: #{psa_attention_generation.2} parent=5 // pred_check
      %p474 = pneg %p473
    $region38: #{psa_attention_generation.2} parent=5 // pred_check_branch
      %476 = sbr.rel (%p474) target = $region40
    $region39: #{psa_attention_generation.2} parent=5 // pred_region
      %s477 = ssub.s32 %s9, 2
      // Predicated region
      $region41: #{psa_attention_generation.2} parent=39 // pred_check
        %p478 = pneg %p122
      $region42: #{psa_attention_generation.2} parent=39 // pred_check_branch
        %480 = sbr.rel (%p478) target = $region44
      $region43: #{psa_attention_generation.2} parent=39 // pred_region
        %s481 = smul.u32 16, %s21
        %p482 = scmp.lt.s32.totalorder %s20, 1
        %s483 = scalar_select %p482, %s20, 1
        %p484 = scmp.lt.s32.totalorder %s481, 15
        %s485 = scalar_select %p484, %s481, 15
        %s486 = smul.addr %s483, 16
        %s487 = sadd.s32 %s485, %s486
        %s488 = smul.addr %s487, 8
        %s489 = scalar_lea.vmem %s3, %s488
      $region44: #{psa_attention_generation.2} parent=39 // pred_fallthru
        _
    $region40: #{psa_attention_generation.2} parent=5 // pred_fallthru
      _
  $region6: #{psa_attention_generation.2} parent=0 // loop_footer
    %s13 = sadd.s32 1, %s9
  $region7: #{psa_attention_generation.2} parent=0 // loop_footer_branch
    %8 = sbr.rel target = $region3
  $region8: #{psa_attention_generation.2} parent=0 // loop_exit
    _

// kernel: psa_attention_generation.3
$region0: #{psa_attention_generation.3}
  #allocation0 [shape = 'u32[]', space=smem, size = 0x4, offset = 0x4, fixed_abs, tag = 'smem constant byte address 0x4 - core index']
  #allocation1 [shape = 'u32[144,128]{1,0:T(1,128)}', space=vmem, size = 0x12000, scoped, tag = 'internal scratch']
  %s0 = inlined_call_operand.vmem [shape: f32[2,128,128], index: 0, kind: input, shape index: {}]
  %s1 = inlined_call_operand.vmem [shape: f32[128,128], index: 1, kind: input, shape index: {}]
  %s2 = inlined_call_operand.vmem [shape: f32[1,128], index: 2, kind: input, shape index: {}]
  %s3 = inlined_call_operand.vmem [shape: f32[128,128], index: 3, kind: input, shape index: {}]
  %s4 = inlined_call_operand.vmem [shape: f32[1,128], index: 4, kind: input, shape index: {}]
  %s5 = inlined_call_operand.vmem [shape: f32[2,128,128], index: 5, kind: output, shape index: {}]
  %s6 = sld [smem:[#allocation0]]
  $region53: #{psa_attention_generation.3} parent=0
    _
  %s8 = ssub.s32 1, %s6
  %s9 = scalar_select 0, %s8, %s6
  loop: start=0, step=1, limit=4
  $region2: #{psa_attention_generation.3} parent=0 // loop_pre_header
    _
  $region3: #{psa_attention_generation.3} parent=0 // loop_header
    %s11 = sphi 0, %s15
    %p12 = scmp.ge.s32.totalorder %s11, 4
    %s18 = sphi 0, %s30
    %s19 = sphi 0, %s26
    %s20 = sphi 0, %s18
    %s21 = sphi 0, %s19
    %s22 = sphi 0, %s20
    %s23 = sphi 0, %s21
    %s33 = sphi 0, %s35
    %s36 = sphi 0, %s33
    %s37 = sphi 0, %s36
    %s53 = sphi 0, %s37
    %s57 = sphi 0, %s57
    %s59 = sphi 0, %s57
    %s60 = sphi 0, %s59
    %s74 = sphi 0, %s60
    %s78 = sphi 0, %s78
    %s80 = sphi 0, %s78
    %s81 = sphi 0, %s80
    %s95 = sphi 0, %s81
    %s99 = sphi 0, %s99
    %s101 = sphi 0, %s99
    %s102 = sphi 0, %s101
    %s116 = sphi 0, %s102
    %s120 = sphi 0, %s120
    %s122 = sphi 0, %s120
    %s123 = sphi 0, %s122
    %s137 = sphi 0, %s123
    %s145 = sphi 0, %s147
    %s148 = sphi 0, %s145
    %s149 = sphi 0, %s148
    %s165 = sphi 0, %s149
  $region4: #{psa_attention_generation.3} parent=0 // loop_header_branch
    %14 = sbr.rel (%p12) target = $region8
  $region5: #{psa_attention_generation.3} parent=0 // loop_body
    %s16 = ssub.s32 %s11, 1
    %s17 = ssub.s32 %s11, 2
    %s24 = sadd.s32 1, %s19
    %p25 = scmp.ge.s32.totalorder %s24, 1
    %s26 = scalar_select %p25, 0, %s24
    %s27 = sadd.s32 1, %s18
    %s28 = scalar_select %p25, %s27, %s18
    %p29 = scmp.ge.s32.totalorder %s28, 2
    %s30 = scalar_select %p29, 0, %s28
    %s31 = ssub.s32 %s18, %s30
    %p32 = scmp.eq.s32.totalorder %s31, 0
    %s34 = sadd.s32 %s33, 1
    %s35 = scalar_select %p32, %s33, %s34
    %p38 = pneg %p32
    %p39 = scmp.eq.s32.totalorder %s11, 1
    %p40 = por %p38, %p39
    %p41 = scmp.ne.s32.totalorder %s33, %s36
    %p42 = scmp.eq.s32.totalorder %s11, 0
    %p43 = por %p41, %p42
    %p44 = scmp.ne.s32.totalorder %s33, %s36
    %p45 = scmp.eq.s32.totalorder %s16, 1
    %p46 = por %p44, %p45
    %p47 = scmp.ne.s32.totalorder %s36, %s37
    %p48 = scmp.eq.s32.totalorder %s16, 0
    %p49 = por %p47, %p48
    %p50 = scmp.ne.s32.totalorder %s36, %s37
    %p51 = scmp.eq.s32.totalorder %s17, 1
    %p52 = por %p50, %p51
    %p54 = scmp.ne.s32.totalorder %s37, %s53
    %p55 = scmp.eq.s32.totalorder %s17, 0
    %p56 = por %p54, %p55
    %s58 = sadd.s32 %s57, 1
    %p61 = scmp.eq.s32.totalorder %s11, 1
    %p62 = scmp.ne.s32.totalorder %s57, %s59
    %p63 = scmp.eq.s32.totalorder %s11, 0
    %p64 = por %p62, %p63
    %p65 = scmp.ne.s32.totalorder %s57, %s59
    %p66 = scmp.eq.s32.totalorder %s16, 1
    %p67 = por %p65, %p66
    %p68 = scmp.ne.s32.totalorder %s59, %s60
    %p69 = scmp.eq.s32.totalorder %s16, 0
    %p70 = por %p68, %p69
    %p71 = scmp.ne.s32.totalorder %s59, %s60
    %p72 = scmp.eq.s32.totalorder %s17, 1
    %p73 = por %p71, %p72
    %p75 = scmp.ne.s32.totalorder %s60, %s74
    %p76 = scmp.eq.s32.totalorder %s17, 0
    %p77 = por %p75, %p76
    %s79 = sadd.s32 %s78, 1
    %p82 = scmp.eq.s32.totalorder %s11, 1
    %p83 = scmp.ne.s32.totalorder %s78, %s80
    %p84 = scmp.eq.s32.totalorder %s11, 0
    %p85 = por %p83, %p84
    %p86 = scmp.ne.s32.totalorder %s78, %s80
    %p87 = scmp.eq.s32.totalorder %s16, 1
    %p88 = por %p86, %p87
    %p89 = scmp.ne.s32.totalorder %s80, %s81
    %p90 = scmp.eq.s32.totalorder %s16, 0
    %p91 = por %p89, %p90
    %p92 = scmp.ne.s32.totalorder %s80, %s81
    %p93 = scmp.eq.s32.totalorder %s17, 1
    %p94 = por %p92, %p93
    %p96 = scmp.ne.s32.totalorder %s81, %s95
    %p97 = scmp.eq.s32.totalorder %s17, 0
    %p98 = por %p96, %p97
    %s100 = sadd.s32 %s99, 1
    %p103 = scmp.eq.s32.totalorder %s11, 1
    %p104 = scmp.ne.s32.totalorder %s99, %s101
    %p105 = scmp.eq.s32.totalorder %s11, 0
    %p106 = por %p104, %p105
    %p107 = scmp.ne.s32.totalorder %s99, %s101
    %p108 = scmp.eq.s32.totalorder %s16, 1
    %p109 = por %p107, %p108
    %p110 = scmp.ne.s32.totalorder %s101, %s102
    %p111 = scmp.eq.s32.totalorder %s16, 0
    %p112 = por %p110, %p111
    %p113 = scmp.ne.s32.totalorder %s101, %s102
    %p114 = scmp.eq.s32.totalorder %s17, 1
    %p115 = por %p113, %p114
    %p117 = scmp.ne.s32.totalorder %s102, %s116
    %p118 = scmp.eq.s32.totalorder %s17, 0
    %p119 = por %p117, %p118
    %s121 = sadd.s32 %s120, 1
    %p124 = scmp.eq.s32.totalorder %s11, 1
    %p125 = scmp.ne.s32.totalorder %s120, %s122
    %p126 = scmp.eq.s32.totalorder %s11, 0
    %p127 = por %p125, %p126
    %p128 = scmp.ne.s32.totalorder %s120, %s122
    %p129 = scmp.eq.s32.totalorder %s16, 1
    %p130 = por %p128, %p129
    %p131 = scmp.ne.s32.totalorder %s122, %s123
    %p132 = scmp.eq.s32.totalorder %s16, 0
    %p133 = por %p131, %p132
    %p134 = scmp.ne.s32.totalorder %s122, %s123
    %p135 = scmp.eq.s32.totalorder %s17, 1
    %p136 = por %p134, %p135
    %p138 = scmp.ne.s32.totalorder %s123, %s137
    %p139 = scmp.eq.s32.totalorder %s17, 0
    %p140 = por %p138, %p139
    %s141 = ssub.s32 %s18, %s30
    %s142 = ssub.s32 %s19, %s26
    %s143 = sor.u32 %s141, %s142
    %p144 = scmp.eq.s32.totalorder %s143, 0
    %s146 = sadd.s32 %s145, 1
    %s147 = scalar_select %p144, %s145, %s146
    %p150 = pneg %p144
    %p151 = scmp.eq.s32.totalorder %s11, 1
    %p152 = por %p150, %p151
    %p153 = scmp.ne.s32.totalorder %s145, %s148
    %p154 = scmp.eq.s32.totalorder %s11, 0
    %p155 = por %p153, %p154
    %p156 = scmp.ne.s32.totalorder %s145, %s148
    %p157 = scmp.eq.s32.totalorder %s16, 1
    %p158 = por %p156, %p157
    %p159 = scmp.ne.s32.totalorder %s148, %s149
    %p160 = scmp.eq.s32.totalorder %s16, 0
    %p161 = por %p159, %p160
    %p162 = scmp.ne.s32.totalorder %s148, %s149
    %p163 = scmp.eq.s32.totalorder %s17, 1
    %p164 = por %p162, %p163
    %p166 = scmp.ne.s32.totalorder %s149, %s165
    %p167 = scmp.eq.s32.totalorder %s17, 0
    %p168 = por %p166, %p167
    %p169 = scmp.le.s32.totalorder 1, %s11
    %p170 = scmp.lt.s32.totalorder %s11, 3
    %p171 = pnand %p169, %p170
    %p172 = pneg %p171
    // Predicated region
    $region9: #{psa_attention_generation.3} parent=5 // pred_check
      _
    $region10: #{psa_attention_generation.3} parent=5 // pred_check_branch
      %174 = sbr.rel (%p171) target = $region12
    $region11: #{psa_attention_generation.3} parent=5 // pred_region
      %s175 = ssub.s32 %s11, 1
      // Predicated region
      $region13: #{psa_attention_generation.3} parent=11 // pred_check
        %p176 = pneg %p70
      $region14: #{psa_attention_generation.3} parent=11 // pred_check_branch
        %178 = sbr.rel (%p176) target = $region16
      $region15: #{psa_attention_generation.3} parent=11 // pred_region
        _
      $region16: #{psa_attention_generation.3} parent=11 // pred_fallthru
        _
      // Predicated region
      $region17: #{psa_attention_generation.3} parent=11 // pred_check
        %p179 = pneg %p91
      $region18: #{psa_attention_generation.3} parent=11 // pred_check_branch
        %181 = sbr.rel (%p179) target = $region20
      $region19: #{psa_attention_generation.3} parent=11 // pred_region
        _
      $region20: #{psa_attention_generation.3} parent=11 // pred_fallthru
        _
      // Predicated region
      $region21: #{psa_attention_generation.3} parent=11 // pred_check
        %p182 = pneg %p112
      $region22: #{psa_attention_generation.3} parent=11 // pred_check_branch
        %184 = sbr.rel (%p182) target = $region24
      $region23: #{psa_attention_generation.3} parent=11 // pred_region
        _
      $region24: #{psa_attention_generation.3} parent=11 // pred_fallthru
        _
      // Predicated region
      $region25: #{psa_attention_generation.3} parent=11 // pred_check
        %p185 = pneg %p133
      $region26: #{psa_attention_generation.3} parent=11 // pred_check_branch
        %187 = sbr.rel (%p185) target = $region28
      $region27: #{psa_attention_generation.3} parent=11 // pred_region
        _
      $region28: #{psa_attention_generation.3} parent=11 // pred_fallthru
        _
    $region12: #{psa_attention_generation.3} parent=5 // pred_fallthru
      _
    %p188 = scmp.lt.s32.totalorder %s11, 2
    // Predicated region
    $region29: #{psa_attention_generation.3} parent=5 // pred_check
      %p189 = pneg %p188
    $region30: #{psa_attention_generation.3} parent=5 // pred_check_branch
      %191 = sbr.rel (%p189) target = $region32
    $region31: #{psa_attention_generation.3} parent=5 // pred_region
      // Predicated region
      $region33: #{psa_attention_generation.3} parent=31 // pred_check
        %p192 = pneg %p43
      $region34: #{psa_attention_generation.3} parent=31 // pred_check_branch
        %194 = sbr.rel (%p192) target = $region36
      $region35: #{psa_attention_generation.3} parent=31 // pred_region
        %p195 = scmp.lt.s32.totalorder %s18, 1
        %s196 = scalar_select %p195, %s18, 1
        %s197 = smul.addr %s196, 16
        %s198 = smul.addr %s197, 8
        %s199 = scalar_lea.vmem %s0, %s198
      $region36: #{psa_attention_generation.3} parent=31 // pred_fallthru
        _
    $region32: #{psa_attention_generation.3} parent=5 // pred_fallthru
      _
    %p200 = scmp.le.s32.totalorder 1, %s11
    %p201 = scmp.lt.s32.totalorder %s11, 3
    %p202 = pnand %p200, %p201
    %p203 = pneg %p202
    // Predicated region
    $region37: #{psa_attention_generation.3} parent=5 // pred_check
      _
    $region38: #{psa_attention_generation.3} parent=5 // pred_check_branch
      %205 = sbr.rel (%p202) target = $region40
    $region39: #{psa_attention_generation.3} parent=5 // pred_region
      %s206 = ssub.s32 %s11, 1
      %p207 = scmp.lt.s32.totalorder %s20, 1
      %s208 = scalar_select %p207, %s20, 1
      %s209 = smul.addr %s208, 16
      %s210 = smul.addr %s209, 8
      %s211 = scalar_lea.vmem %s0, %s210
      %p212 = pneg %p49
      %p213 = pneg %p46
      %p214 = pneg %p70
      %p215 = pneg %p67
      %p216 = pneg %p91
      %p217 = pneg %p88
      %p218 = pneg %p112
      %p219 = pneg %p109
      %p220 = pneg %p133
      %p221 = pneg %p130
      %p222 = pneg %p161
      %p223 = pneg %p158
      %p224 = scmp.lt.s32.totalorder %s20, 1
      %s225 = scalar_select %p224, %s20, 1
      %p226 = scmp.lt.s32.totalorder %s21, 0
      %s227 = scalar_select %p226, %s21, 0
      %s228 = smul.addr %s225, 16
      %s229 = sadd.s32 %s227, %s228
      %s230 = smul.addr %s229, 8
      %s231 = scalar_lea.vmem %s5, %s230
      %p232 = scmp.lt.s32.totalorder %s20, 1
      %s233 = scalar_select %p232, %s20, 1
      %s234 = smul.addr %s233, 16
      %s235 = smul.addr %s234, 8
      %s236 = scalar_lea.vmem %s0, %s235
      %p237 = scmp.lt.s32.totalorder %s20, 1
      %s238 = scalar_select %p237, %s20, 1
      %p239 = scmp.lt.s32.totalorder %s21, 0
      %s240 = scalar_select %p239, %s21, 0
      %s241 = smul.addr %s238, 16
      %s242 = sadd.s32 %s240, %s241
      %s243 = smul.addr %s242, 8
      %s244 = scalar_lea.vmem %s5, %s243
      %s245 = smul.u32 %s21, 128
      %s246 = scalar_lea.vmem %s236, %s245
      %v247 = vld [vmem:[%s246] sm:$0xff]
      %v248 = vld [vmem:[%s246 + $0x8] sm:$0xff]
      %v249 = vld [vmem:[%s246 + $0x10] sm:$0xff]
      %v250 = vld [vmem:[%s246 + $0x18] sm:$0xff]
      %v251 = vld [vmem:[%s246 + $0x20] sm:$0xff]
      %v252 = vld [vmem:[%s246 + $0x28] sm:$0xff]
      %v253 = vld [vmem:[%s246 + $0x30] sm:$0xff]
      %v254 = vld [vmem:[%s246 + $0x38] sm:$0xff]
      %v255 = vld [vmem:[%s246 + $0x40] sm:$0xff]
      %v256 = vld [vmem:[%s246 + $0x48] sm:$0xff]
      %v257 = vld [vmem:[%s246 + $0x50] sm:$0xff]
      %v258 = vld [vmem:[%s246 + $0x58] sm:$0xff]
      %v259 = vld [vmem:[%s246 + $0x60] sm:$0xff]
      %v260 = vld [vmem:[%s246 + $0x68] sm:$0xff]
      %v261 = vld [vmem:[%s246 + $0x70] sm:$0xff]
      %v262 = vld [vmem:[%s246 + $0x78] sm:$0xff]
      %v263 = vld [vmem:[%s1] sm:$0xff]
      %v264 = vld [vmem:[%s1 + $0x8] sm:$0xff]
      %v265 = vld [vmem:[%s1 + $0x10] sm:$0xff]
      %v266 = vld [vmem:[%s1 + $0x18] sm:$0xff]
      %v267 = vld [vmem:[%s1 + $0x20] sm:$0xff]
      %v268 = vld [vmem:[%s1 + $0x28] sm:$0xff]
      %v269 = vld [vmem:[%s1 + $0x30] sm:$0xff]
      %v270 = vld [vmem:[%s1 + $0x38] sm:$0xff]
      %v271 = vld [vmem:[%s1 + $0x40] sm:$0xff]
      %v272 = vld [vmem:[%s1 + $0x48] sm:$0xff]
      %v273 = vld [vmem:[%s1 + $0x50] sm:$0xff]
      %v274 = vld [vmem:[%s1 + $0x58] sm:$0xff]
      %v275 = vld [vmem:[%s1 + $0x60] sm:$0xff]
      %v276 = vld [vmem:[%s1 + $0x68] sm:$0xff]
      %v277 = vld [vmem:[%s1 + $0x70] sm:$0xff]
      %v278 = vld [vmem:[%s1 + $0x78] sm:$0xff]
      %v279 = vld [vmem:[%s2] sm:$0x1]
      %v281 = vlaneseq
      %v282 = vshrl.u32 %v281, 7
      %v283 = vsub.s32 0, %v282
      %v284 = vrot.slane %v279, %v283
      %286 = vmatprep.subr.mxu0 0.0
      %287 = vmatpush1.msra.mxu0 %v278
      %288 = vmatprep.subr.mxu0 0.0
      %289 = vmatpush1.msra.mxu0 %v277
      %290 = vmatprep.subr.mxu0 0.0
      %291 = vmatpush1.msra.mxu0 %v276
      %292 = vmatprep.subr.mxu0 0.0
      %293 = vmatpush1.msra.mxu0 %v275
      %294 = vmatprep.subr.mxu0 0.0
      %295 = vmatpush1.msra.mxu0 %v274
      %296 = vmatprep.subr.mxu0 0.0
      %297 = vmatpush1.msra.mxu0 %v273
      %298 = vmatprep.subr.mxu0 0.0
      %299 = vmatpush1.msra.mxu0 %v272
      %300 = vmatprep.subr.mxu0 0.0
      %301 = vmatpush1.msra.mxu0 %v271
      %302 = vmatprep.subr.mxu0 0.0
      %303 = vmatpush1.msra.mxu0 %v270
      %304 = vmatprep.subr.mxu0 0.0
      %305 = vmatpush1.msra.mxu0 %v269
      %306 = vmatprep.subr.mxu0 0.0
      %307 = vmatpush1.msra.mxu0 %v268
      %308 = vmatprep.subr.mxu0 0.0
      %309 = vmatpush1.msra.mxu0 %v267
      %310 = vmatprep.subr.mxu0 0.0
      %311 = vmatpush1.msra.mxu0 %v266
      %312 = vmatprep.subr.mxu0 0.0
      %313 = vmatpush1.msra.mxu0 %v265
      %314 = vmatprep.subr.mxu0 0.0
      %315 = vmatpush1.msra.mxu0 %v264
      %316 = vmatprep.subr.mxu0 0.0
      %317 = vmatpush1.msra.mxu0 %v263
      %318 = vmatprep.subr.mxu0 0.0
      %319 = vmatpush2.msra.mxu0 0.0
      %320 = vmatprep.subr.mxu0 0.0
      %321 = vmatpush2.msra.mxu0 0.0
      %322 = vmatprep.subr.mxu0 0.0
      %323 = vmatpush2.msra.mxu0 0.0
      %324 = vmatprep.subr.mxu0 0.0
      %325 = vmatpush2.msra.mxu0 0.0
      %326 = vmatprep.subr.mxu0 0.0
      %327 = vmatpush2.msra.mxu0 0.0
      %328 = vmatprep.subr.mxu0 0.0
      %329 = vmatpush2.msra.mxu0 0.0
      %330 = vmatprep.subr.mxu0 0.0
      %331 = vmatpush2.msra.mxu0 0.0
      %332 = vmatprep.subr.mxu0 0.0
      %333 = vmatpush2.msra.mxu0 0.0
      %334 = vmatprep.subr.mxu0 0.0
      %335 = vmatpush2.msra.mxu0 0.0
      %336 = vmatprep.subr.mxu0 0.0
      %337 = vmatpush2.msra.mxu0 0.0
      %338 = vmatprep.subr.mxu0 0.0
      %339 = vmatpush2.msra.mxu0 0.0
      %340 = vmatprep.subr.mxu0 0.0
      %341 = vmatpush2.msra.mxu0 0.0
      %342 = vmatprep.subr.mxu0 0.0
      %343 = vmatpush2.msra.mxu0 0.0
      %344 = vmatprep.subr.mxu0 0.0
      %345 = vmatpush2.msra.mxu0 0.0
      %346 = vmatprep.subr.mxu0 0.0
      %347 = vmatpush2.msra.mxu0 0.0
      %348 = vmatprep.subr.mxu0 0.0
      %349 = vmatpush2.msra.mxu0 0.0
      %350 = vmatprep.mubr.f32.mxu0 0.0
      %351 = vmatmul.mubr.f32.gmra.mxu0 %v247
      %v352 = vpop.f32.mrf.mxu0
      %v353 = vadd.f32 %v284, %v352
      %v354 = vpop.f32.mrf.mxu0
      %355 = vmatprep.mubr.f32.mxu0 0.0
      %356 = vmatmul.mubr.f32.gmra.mxu0 %v248
      %v357 = vpop.f32.mrf.mxu0
      %v358 = vadd.f32 %v284, %v357
      %v359 = vpop.f32.mrf.mxu0
      %360 = vmatprep.mubr.f32.mxu0 0.0
      %361 = vmatmul.mubr.f32.gmra.mxu0 %v249
      %v362 = vpop.f32.mrf.mxu0
      %v363 = vadd.f32 %v284, %v362
      %v364 = vpop.f32.mrf.mxu0
      %365 = vmatprep.mubr.f32.mxu0 0.0
      %366 = vmatmul.mubr.f32.gmra.mxu0 %v250
      %v367 = vpop.f32.mrf.mxu0
      %v368 = vadd.f32 %v284, %v367
      %v369 = vpop.f32.mrf.mxu0
      %370 = vmatprep.mubr.f32.mxu0 0.0
      %371 = vmatmul.mubr.f32.gmra.mxu0 %v251
      %v372 = vpop.f32.mrf.mxu0
      %v373 = vadd.f32 %v284, %v372
      %v374 = vpop.f32.mrf.mxu0
      %375 = vmatprep.mubr.f32.mxu0 0.0
      %376 = vmatmul.mubr.f32.gmra.mxu0 %v252
      %v377 = vpop.f32.mrf.mxu0
      %v378 = vadd.f32 %v284, %v377
      %v379 = vpop.f32.mrf.mxu0
      %380 = vmatprep.mubr.f32.mxu0 0.0
      %381 = vmatmul.mubr.f32.gmra.mxu0 %v253
      %v382 = vpop.f32.mrf.mxu0
      %v383 = vadd.f32 %v284, %v382
      %v384 = vpop.f32.mrf.mxu0
      %385 = vmatprep.mubr.f32.mxu0 0.0
      %386 = vmatmul.mubr.f32.gmra.mxu0 %v254
      %v387 = vpop.f32.mrf.mxu0
      %v388 = vadd.f32 %v284, %v387
      %v389 = vpop.f32.mrf.mxu0
      %390 = vmatprep.mubr.f32.mxu0 0.0
      %391 = vmatmul.mubr.f32.gmra.mxu0 %v255
      %v392 = vpop.f32.mrf.mxu0
      %v393 = vadd.f32 %v284, %v392
      %v394 = vpop.f32.mrf.mxu0
      %395 = vmatprep.mubr.f32.mxu0 0.0
      %396 = vmatmul.mubr.f32.gmra.mxu0 %v256
      %v397 = vpop.f32.mrf.mxu0
      %v398 = vadd.f32 %v284, %v397
      %v399 = vpop.f32.mrf.mxu0
      %400 = vmatprep.mubr.f32.mxu0 0.0
      %401 = vmatmul.mubr.f32.gmra.mxu0 %v257
      %v402 = vpop.f32.mrf.mxu0
      %v403 = vadd.f32 %v284, %v402
      %v404 = vpop.f32.mrf.mxu0
      %405 = vmatprep.mubr.f32.mxu0 0.0
      %406 = vmatmul.mubr.f32.gmra.mxu0 %v258
      %v407 = vpop.f32.mrf.mxu0
      %v408 = vadd.f32 %v284, %v407
      %v409 = vpop.f32.mrf.mxu0
      %410 = vmatprep.mubr.f32.mxu0 0.0
      %411 = vmatmul.mubr.f32.gmra.mxu0 %v259
      %v412 = vpop.f32.mrf.mxu0
      %v413 = vadd.f32 %v284, %v412
      %v414 = vpop.f32.mrf.mxu0
      %415 = vmatprep.mubr.f32.mxu0 0.0
      %416 = vmatmul.mubr.f32.gmra.mxu0 %v260
      %v417 = vpop.f32.mrf.mxu0
      %v418 = vadd.f32 %v284, %v417
      %v419 = vpop.f32.mrf.mxu0
      %420 = vmatprep.mubr.f32.mxu0 0.0
      %421 = vmatmul.mubr.f32.gmra.mxu0 %v261
      %v422 = vpop.f32.mrf.mxu0
      %v423 = vadd.f32 %v284, %v422
      %v424 = vpop.f32.mrf.mxu0
      %425 = vmatprep.mubr.f32.mxu0 0.0
      %426 = vmatmul.mubr.f32.gmra.mxu0 %v262
      %v427 = vpop.f32.mrf.mxu0
      %v428 = vadd.f32 %v284, %v427
      %v429 = vpop.f32.mrf.mxu0
      %430 = vdwg.mxu0
      %v431 = vmax.f32 %v353, 0.0
      %v432 = vmax.f32 %v358, 0.0
      %v433 = vmax.f32 %v363, 0.0
      %v434 = vmax.f32 %v368, 0.0
      %v435 = vmax.f32 %v373, 0.0
      %v436 = vmax.f32 %v378, 0.0
      %v437 = vmax.f32 %v383, 0.0
      %v438 = vmax.f32 %v388, 0.0
      %v439 = vmax.f32 %v393, 0.0
      %v440 = vmax.f32 %v398, 0.0
      %v441 = vmax.f32 %v403, 0.0
      %v442 = vmax.f32 %v408, 0.0
      %v443 = vmax.f32 %v413, 0.0
      %v444 = vmax.f32 %v418, 0.0
      %v445 = vmax.f32 %v423, 0.0
      %v446 = vmax.f32 %v428, 0.0
      %v447 = vld [vmem:[%s3] sm:$0xff]
      %v448 = vld [vmem:[%s3 + $0x8] sm:$0xff]
      %v449 = vld [vmem:[%s3 + $0x10] sm:$0xff]
      %v450 = vld [vmem:[%s3 + $0x18] sm:$0xff]
      %v451 = vld [vmem:[%s3 + $0x20] sm:$0xff]
      %v452 = vld [vmem:[%s3 + $0x28] sm:$0xff]
      %v453 = vld [vmem:[%s3 + $0x30] sm:$0xff]
      %v454 = vld [vmem:[%s3 + $0x38] sm:$0xff]
      %v455 = vld [vmem:[%s3 + $0x40] sm:$0xff]
      %v456 = vld [vmem:[%s3 + $0x48] sm:$0xff]
      %v457 = vld [vmem:[%s3 + $0x50] sm:$0xff]
      %v458 = vld [vmem:[%s3 + $0x58] sm:$0xff]
      %v459 = vld [vmem:[%s3 + $0x60] sm:$0xff]
      %v460 = vld [vmem:[%s3 + $0x68] sm:$0xff]
      %v461 = vld [vmem:[%s3 + $0x70] sm:$0xff]
      %v462 = vld [vmem:[%s3 + $0x78] sm:$0xff]
      %v463 = vld [vmem:[%s4] sm:$0x1]
      %v465 = vlaneseq
      %v466 = vshrl.u32 %v465, 7
      %v467 = vsub.s32 0, %v466
      %v468 = vrot.slane %v463, %v467
      %470 = vmatprep.subr.mxu0 0.0
      %471 = vmatpush1.msra.mxu0 %v462
      %472 = vmatprep.subr.mxu0 0.0
      %473 = vmatpush1.msra.mxu0 %v461
      %474 = vmatprep.subr.mxu0 0.0
      %475 = vmatpush1.msra.mxu0 %v460
      %476 = vmatprep.subr.mxu0 0.0
      %477 = vmatpush1.msra.mxu0 %v459
      %478 = vmatprep.subr.mxu0 0.0
      %479 = vmatpush1.msra.mxu0 %v458
      %480 = vmatprep.subr.mxu0 0.0
      %481 = vmatpush1.msra.mxu0 %v457
      %482 = vmatprep.subr.mxu0 0.0
      %483 = vmatpush1.msra.mxu0 %v456
      %484 = vmatprep.subr.mxu0 0.0
      %485 = vmatpush1.msra.mxu0 %v455
      %486 = vmatprep.subr.mxu0 0.0
      %487 = vmatpush1.msra.mxu0 %v454
      %488 = vmatprep.subr.mxu0 0.0
      %489 = vmatpush1.msra.mxu0 %v453
      %490 = vmatprep.subr.mxu0 0.0
      %491 = vmatpush1.msra.mxu0 %v452
      %492 = vmatprep.subr.mxu0 0.0
      %493 = vmatpush1.msra.mxu0 %v451
      %494 = vmatprep.subr.mxu0 0.0
      %495 = vmatpush1.msra.mxu0 %v450
      %496 = vmatprep.subr.mxu0 0.0
      %497 = vmatpush1.msra.mxu0 %v449
      %498 = vmatprep.subr.mxu0 0.0
      %499 = vmatpush1.msra.mxu0 %v448
      %500 = vmatprep.subr.mxu0 0.0
      %501 = vmatpush1.msra.mxu0 %v447
      %502 = vmatprep.subr.mxu0 0.0
      %503 = vmatpush2.msra.mxu0 0.0
      %504 = vmatprep.subr.mxu0 0.0
      %505 = vmatpush2.msra.mxu0 0.0
      %506 = vmatprep.subr.mxu0 0.0
      %507 = vmatpush2.msra.mxu0 0.0
      %508 = vmatprep.subr.mxu0 0.0
      %509 = vmatpush2.msra.mxu0 0.0
      %510 = vmatprep.subr.mxu0 0.0
      %511 = vmatpush2.msra.mxu0 0.0
      %512 = vmatprep.subr.mxu0 0.0
      %513 = vmatpush2.msra.mxu0 0.0
      %514 = vmatprep.subr.mxu0 0.0
      %515 = vmatpush2.msra.mxu0 0.0
      %516 = vmatprep.subr.mxu0 0.0
      %517 = vmatpush2.msra.mxu0 0.0
      %518 = vmatprep.subr.mxu0 0.0
      %519 = vmatpush2.msra.mxu0 0.0
      %520 = vmatprep.subr.mxu0 0.0
      %521 = vmatpush2.msra.mxu0 0.0
      %522 = vmatprep.subr.mxu0 0.0
      %523 = vmatpush2.msra.mxu0 0.0
      %524 = vmatprep.subr.mxu0 0.0
      %525 = vmatpush2.msra.mxu0 0.0
      %526 = vmatprep.subr.mxu0 0.0
      %527 = vmatpush2.msra.mxu0 0.0
      %528 = vmatprep.subr.mxu0 0.0
      %529 = vmatpush2.msra.mxu0 0.0
      %530 = vmatprep.subr.mxu0 0.0
      %531 = vmatpush2.msra.mxu0 0.0
      %532 = vmatprep.subr.mxu0 0.0
      %533 = vmatpush2.msra.mxu0 0.0
      %534 = vmatprep.mubr.f32.mxu0 0.0
      %535 = vmatmul.mubr.f32.gmra.mxu0 %v431
      %v536 = vpop.f32.mrf.mxu0
      %v537 = vadd.f32 %v468, %v536
      %v538 = vpop.f32.mrf.mxu0
      %539 = vmatprep.mubr.f32.mxu0 0.0
      %540 = vmatmul.mubr.f32.gmra.mxu0 %v432
      %v541 = vpop.f32.mrf.mxu0
      %v542 = vadd.f32 %v468, %v541
      %v543 = vpop.f32.mrf.mxu0
      %544 = vmatprep.mubr.f32.mxu0 0.0
      %545 = vmatmul.mubr.f32.gmra.mxu0 %v433
      %v546 = vpop.f32.mrf.mxu0
      %v547 = vadd.f32 %v468, %v546
      %v548 = vpop.f32.mrf.mxu0
      %549 = vmatprep.mubr.f32.mxu0 0.0
      %550 = vmatmul.mubr.f32.gmra.mxu0 %v434
      %v551 = vpop.f32.mrf.mxu0
      %v552 = vadd.f32 %v468, %v551
      %v553 = vpop.f32.mrf.mxu0
      %554 = vmatprep.mubr.f32.mxu0 0.0
      %555 = vmatmul.mubr.f32.gmra.mxu0 %v435
      %v556 = vpop.f32.mrf.mxu0
      %v557 = vadd.f32 %v468, %v556
      %v558 = vpop.f32.mrf.mxu0
      %559 = vmatprep.mubr.f32.mxu0 0.0
      %560 = vmatmul.mubr.f32.gmra.mxu0 %v436
      %v561 = vpop.f32.mrf.mxu0
      %v562 = vadd.f32 %v468, %v561
      %v563 = vpop.f32.mrf.mxu0
      %564 = vmatprep.mubr.f32.mxu0 0.0
      %565 = vmatmul.mubr.f32.gmra.mxu0 %v437
      %v566 = vpop.f32.mrf.mxu0
      %v567 = vadd.f32 %v468, %v566
      %v568 = vpop.f32.mrf.mxu0
      %569 = vmatprep.mubr.f32.mxu0 0.0
      %570 = vmatmul.mubr.f32.gmra.mxu0 %v438
      %v571 = vpop.f32.mrf.mxu0
      %v572 = vadd.f32 %v468, %v571
      %v573 = vpop.f32.mrf.mxu0
      %574 = vmatprep.mubr.f32.mxu0 0.0
      %575 = vmatmul.mubr.f32.gmra.mxu0 %v439
      %v576 = vpop.f32.mrf.mxu0
      %v577 = vadd.f32 %v468, %v576
      %v578 = vpop.f32.mrf.mxu0
      %579 = vmatprep.mubr.f32.mxu0 0.0
      %580 = vmatmul.mubr.f32.gmra.mxu0 %v440
      %v581 = vpop.f32.mrf.mxu0
      %v582 = vadd.f32 %v468, %v581
      %v583 = vpop.f32.mrf.mxu0
      %584 = vmatprep.mubr.f32.mxu0 0.0
      %585 = vmatmul.mubr.f32.gmra.mxu0 %v441
      %v586 = vpop.f32.mrf.mxu0
      %v587 = vadd.f32 %v468, %v586
      %v588 = vpop.f32.mrf.mxu0
      %589 = vmatprep.mubr.f32.mxu0 0.0
      %590 = vmatmul.mubr.f32.gmra.mxu0 %v442
      %v591 = vpop.f32.mrf.mxu0
      %v592 = vadd.f32 %v468, %v591
      %v593 = vpop.f32.mrf.mxu0
      %594 = vmatprep.mubr.f32.mxu0 0.0
      %595 = vmatmul.mubr.f32.gmra.mxu0 %v443
      %v596 = vpop.f32.mrf.mxu0
      %v597 = vadd.f32 %v468, %v596
      %v598 = vpop.f32.mrf.mxu0
      %599 = vmatprep.mubr.f32.mxu0 0.0
      %600 = vmatmul.mubr.f32.gmra.mxu0 %v444
      %v601 = vpop.f32.mrf.mxu0
      %v602 = vadd.f32 %v468, %v601
      %v603 = vpop.f32.mrf.mxu0
      %604 = vmatprep.mubr.f32.mxu0 0.0
      %605 = vmatmul.mubr.f32.gmra.mxu0 %v445
      %v606 = vpop.f32.mrf.mxu0
      %v607 = vadd.f32 %v468, %v606
      %v608 = vpop.f32.mrf.mxu0
      %609 = vmatprep.mubr.f32.mxu0 0.0
      %610 = vmatmul.mubr.f32.gmra.mxu0 %v446
      %v611 = vpop.f32.mrf.mxu0
      %v612 = vadd.f32 %v468, %v611
      %v613 = vpop.f32.mrf.mxu0
      %614 = vdwg.mxu0
      %615 = vmax.xlane.f32.xlu0 %v537
      %v616 = vpop.xlane.xlu0 %615
      %617 = vmax.xlane.f32.xlu0 %v542
      %v618 = vpop.xlane.xlu0 %617
      %619 = vmax.xlane.f32.xlu0 %v547
      %v620 = vpop.xlane.xlu0 %619
      %621 = vmax.xlane.f32.xlu0 %v552
      %v622 = vpop.xlane.xlu0 %621
      %623 = vmax.xlane.f32.xlu0 %v557
      %v624 = vpop.xlane.xlu0 %623
      %625 = vmax.xlane.f32.xlu0 %v562
      %v626 = vpop.xlane.xlu0 %625
      %627 = vmax.xlane.f32.xlu0 %v567
      %v628 = vpop.xlane.xlu0 %627
      %629 = vmax.xlane.f32.xlu0 %v572
      %v630 = vpop.xlane.xlu0 %629
      %631 = vmax.xlane.f32.xlu0 %v577
      %v632 = vpop.xlane.xlu0 %631
      %633 = vmax.xlane.f32.xlu0 %v582
      %v634 = vpop.xlane.xlu0 %633
      %635 = vmax.xlane.f32.xlu0 %v587
      %v636 = vpop.xlane.xlu0 %635
      %637 = vmax.xlane.f32.xlu0 %v592
      %v638 = vpop.xlane.xlu0 %637
      %639 = vmax.xlane.f32.xlu0 %v597
      %v640 = vpop.xlane.xlu0 %639
      %641 = vmax.xlane.f32.xlu0 %v602
      %v642 = vpop.xlane.xlu0 %641
      %643 = vmax.xlane.f32.xlu0 %v607
      %v644 = vpop.xlane.xlu0 %643
      %645 = vmax.xlane.f32.xlu0 %v612
      %v646 = vpop.xlane.xlu0 %645
      %v647 = vsub.f32 %v537, %v616
      %v648 = vsub.f32 %v542, %v618
      %v649 = vsub.f32 %v547, %v620
      %v650 = vsub.f32 %v552, %v622
      %v651 = vsub.f32 %v557, %v624
      %v652 = vsub.f32 %v562, %v626
      %v653 = vsub.f32 %v567, %v628
      %v654 = vsub.f32 %v572, %v630
      %v655 = vsub.f32 %v577, %v632
      %v656 = vsub.f32 %v582, %v634
      %v657 = vsub.f32 %v587, %v636
      %v658 = vsub.f32 %v592, %v638
      %v659 = vsub.f32 %v597, %v640
      %v660 = vsub.f32 %v602, %v642
      %v661 = vsub.f32 %v607, %v644
      %v662 = vsub.f32 %v612, %v646
      %v663 = vmul.f32 %v647, 1.442695
      %v664 = vpow.pop %v663
      %v665 = vmul.f32 %v648, 1.442695
      %v666 = vpow.pop %v665
      %v667 = vmul.f32 %v649, 1.442695
      %v668 = vpow.pop %v667
      %v669 = vmul.f32 %v650, 1.442695
      %v670 = vpow.pop %v669
      %v671 = vmul.f32 %v651, 1.442695
      %v672 = vpow.pop %v671
      %v673 = vmul.f32 %v652, 1.442695
      %v674 = vpow.pop %v673
      %v675 = vmul.f32 %v653, 1.442695
      %v676 = vpow.pop %v675
      %v677 = vmul.f32 %v654, 1.442695
      %v678 = vpow.pop %v677
      %v679 = vmul.f32 %v655, 1.442695
      %v680 = vpow.pop %v679
      %v681 = vmul.f32 %v656, 1.442695
      %v682 = vpow.pop %v681
      %v683 = vmul.f32 %v657, 1.442695
      %v684 = vpow.pop %v683
      %v685 = vmul.f32 %v658, 1.442695
      %v686 = vpow.pop %v685
      %v687 = vmul.f32 %v659, 1.442695
      %v688 = vpow.pop %v687
      %v689 = vmul.f32 %v660, 1.442695
      %v690 = vpow.pop %v689
      %v691 = vmul.f32 %v661, 1.442695
      %v692 = vpow.pop %v691
      %v693 = vmul.f32 %v662, 1.442695
      %v694 = vpow.pop %v693
      %695 = vadd.xlane.f32.xlu0 %v664
      %v696 = vpop.xlane.xlu0 %695
      %697 = vadd.xlane.f32.xlu0 %v666
      %v698 = vpop.xlane.xlu0 %697
      %699 = vadd.xlane.f32.xlu0 %v668
      %v700 = vpop.xlane.xlu0 %699
      %701 = vadd.xlane.f32.xlu0 %v670
      %v702 = vpop.xlane.xlu0 %701
      %703 = vadd.xlane.f32.xlu0 %v672
      %v704 = vpop.xlane.xlu0 %703
      %705 = vadd.xlane.f32.xlu0 %v674
      %v706 = vpop.xlane.xlu0 %705
      %707 = vadd.xlane.f32.xlu0 %v676
      %v708 = vpop.xlane.xlu0 %707
      %709 = vadd.xlane.f32.xlu0 %v678
      %v710 = vpop.xlane.xlu0 %709
      %711 = vadd.xlane.f32.xlu0 %v680
      %v712 = vpop.xlane.xlu0 %711
      %713 = vadd.xlane.f32.xlu0 %v682
      %v714 = vpop.xlane.xlu0 %713
      %715 = vadd.xlane.f32.xlu0 %v684
      %v716 = vpop.xlane.xlu0 %715
      %717 = vadd.xlane.f32.xlu0 %v686
      %v718 = vpop.xlane.xlu0 %717
      %719 = vadd.xlane.f32.xlu0 %v688
      %v720 = vpop.xlane.xlu0 %719
      %721 = vadd.xlane.f32.xlu0 %v690
      %v722 = vpop.xlane.xlu0 %721
      %723 = vadd.xlane.f32.xlu0 %v692
      %v724 = vpop.xlane.xlu0 %723
      %725 = vadd.xlane.f32.xlu0 %v694
      %v726 = vpop.xlane.xlu0 %725
      %v727 = vld [vmem:[%s236] sm:$0xff]
      %v728 = vld [vmem:[%s236 + $0x8] sm:$0xff]
      %v729 = vld [vmem:[%s236 + $0x10] sm:$0xff]
      %v730 = vld [vmem:[%s236 + $0x18] sm:$0xff]
      %v731 = vld [vmem:[%s236 + $0x20] sm:$0xff]
      %v732 = vld [vmem:[%s236 + $0x28] sm:$0xff]
      %v733 = vld [vmem:[%s236 + $0x30] sm:$0xff]
      %v734 = vld [vmem:[%s236 + $0x38] sm:$0xff]
      %v735 = vld [vmem:[%s236 + $0x40] sm:$0xff]
      %v736 = vld [vmem:[%s236 + $0x48] sm:$0xff]
      %v737 = vld [vmem:[%s236 + $0x50] sm:$0xff]
      %v738 = vld [vmem:[%s236 + $0x58] sm:$0xff]
      %v739 = vld [vmem:[%s236 + $0x60] sm:$0xff]
      %v740 = vld [vmem:[%s236 + $0x68] sm:$0xff]
      %v741 = vld [vmem:[%s236 + $0x70] sm:$0xff]
      %v742 = vld [vmem:[%s236 + $0x78] sm:$0xff]
      %743 = vmatprep.subr.mxu0 0.0
      %744 = vmatpush1.msra.mxu0 %v742
      %745 = vmatprep.subr.mxu0 0.0
      %746 = vmatpush1.msra.mxu0 %v741
      %747 = vmatprep.subr.mxu0 0.0
      %748 = vmatpush1.msra.mxu0 %v740
      %749 = vmatprep.subr.mxu0 0.0
      %750 = vmatpush1.msra.mxu0 %v739
      %751 = vmatprep.subr.mxu0 0.0
      %752 = vmatpush1.msra.mxu0 %v738
      %753 = vmatprep.subr.mxu0 0.0
      %754 = vmatpush1.msra.mxu0 %v737
      %755 = vmatprep.subr.mxu0 0.0
      %756 = vmatpush1.msra.mxu0 %v736
      %757 = vmatprep.subr.mxu0 0.0
      %758 = vmatpush1.msra.mxu0 %v735
      %759 = vmatprep.subr.mxu0 0.0
      %760 = vmatpush1.msra.mxu0 %v734
      %761 = vmatprep.subr.mxu0 0.0
      %762 = vmatpush1.msra.mxu0 %v733
      %763 = vmatprep.subr.mxu0 0.0
      %764 = vmatpush1.msra.mxu0 %v732
      %765 = vmatprep.subr.mxu0 0.0
      %766 = vmatpush1.msra.mxu0 %v731
      %767 = vmatprep.subr.mxu0 0.0
      %768 = vmatpush1.msra.mxu0 %v730
      %769 = vmatprep.subr.mxu0 0.0
      %770 = vmatpush1.msra.mxu0 %v729
      %771 = vmatprep.subr.mxu0 0.0
      %772 = vmatpush1.msra.mxu0 %v728
      %773 = vmatprep.subr.mxu0 0.0
      %774 = vmatpush1.msra.mxu0 %v727
      %775 = vmatprep.subr.mxu0 0.0
      %776 = vmatpush2.msra.mxu0 0.0
      %777 = vmatprep.subr.mxu0 0.0
      %778 = vmatpush2.msra.mxu0 0.0
      %779 = vmatprep.subr.mxu0 0.0
      %780 = vmatpush2.msra.mxu0 0.0
      %781 = vmatprep.subr.mxu0 0.0
      %782 = vmatpush2.msra.mxu0 0.0
      %783 = vmatprep.subr.mxu0 0.0
      %784 = vmatpush2.msra.mxu0 0.0
      %785 = vmatprep.subr.mxu0 0.0
      %786 = vmatpush2.msra.mxu0 0.0
      %787 = vmatprep.subr.mxu0 0.0
      %788 = vmatpush2.msra.mxu0 0.0
      %789 = vmatprep.subr.mxu0 0.0
      %790 = vmatpush2.msra.mxu0 0.0
      %791 = vmatprep.subr.mxu0 0.0
      %792 = vmatpush2.msra.mxu0 0.0
      %793 = vmatprep.subr.mxu0 0.0
      %794 = vmatpush2.msra.mxu0 0.0
      %795 = vmatprep.subr.mxu0 0.0
      %796 = vmatpush2.msra.mxu0 0.0
      %797 = vmatprep.subr.mxu0 0.0
      %798 = vmatpush2.msra.mxu0 0.0
      %799 = vmatprep.subr.mxu0 0.0
      %800 = vmatpush2.msra.mxu0 0.0
      %801 = vmatprep.subr.mxu0 0.0
      %802 = vmatpush2.msra.mxu0 0.0
      %803 = vmatprep.subr.mxu0 0.0
      %804 = vmatpush2.msra.mxu0 0.0
      %805 = vmatprep.subr.mxu0 0.0
      %806 = vmatpush2.msra.mxu0 0.0
      %807 = vmatprep.mubr.f32.mxu0 0.0
      %808 = vmatmul.mubr.f32.gmra.mxu0 %v664
      %v809 = vpop.f32.mrf.mxu0
      %v810 = vadd.f32 0.0, %v809
      %v811 = vpop.f32.mrf.mxu0
      %812 = vmatprep.mubr.f32.mxu0 0.0
      %813 = vmatmul.mubr.f32.gmra.mxu0 %v666
      %v814 = vpop.f32.mrf.mxu0
      %v815 = vadd.f32 0.0, %v814
      %v816 = vpop.f32.mrf.mxu0
      %817 = vmatprep.mubr.f32.mxu0 0.0
      %818 = vmatmul.mubr.f32.gmra.mxu0 %v668
      %v819 = vpop.f32.mrf.mxu0
      %v820 = vadd.f32 0.0, %v819
      %v821 = vpop.f32.mrf.mxu0
      %822 = vmatprep.mubr.f32.mxu0 0.0
      %823 = vmatmul.mubr.f32.gmra.mxu0 %v670
      %v824 = vpop.f32.mrf.mxu0
      %v825 = vadd.f32 0.0, %v824
      %v826 = vpop.f32.mrf.mxu0
      %827 = vmatprep.mubr.f32.mxu0 0.0
      %828 = vmatmul.mubr.f32.gmra.mxu0 %v672
      %v829 = vpop.f32.mrf.mxu0
      %v830 = vadd.f32 0.0, %v829
      %v831 = vpop.f32.mrf.mxu0
      %832 = vmatprep.mubr.f32.mxu0 0.0
      %833 = vmatmul.mubr.f32.gmra.mxu0 %v674
      %v834 = vpop.f32.mrf.mxu0
      %v835 = vadd.f32 0.0, %v834
      %v836 = vpop.f32.mrf.mxu0
      %837 = vmatprep.mubr.f32.mxu0 0.0
      %838 = vmatmul.mubr.f32.gmra.mxu0 %v676
      %v839 = vpop.f32.mrf.mxu0
      %v840 = vadd.f32 0.0, %v839
      %v841 = vpop.f32.mrf.mxu0
      %842 = vmatprep.mubr.f32.mxu0 0.0
      %843 = vmatmul.mubr.f32.gmra.mxu0 %v678
      %v844 = vpop.f32.mrf.mxu0
      %v845 = vadd.f32 0.0, %v844
      %v846 = vpop.f32.mrf.mxu0
      %847 = vmatprep.mubr.f32.mxu0 0.0
      %848 = vmatmul.mubr.f32.gmra.mxu0 %v680
      %v849 = vpop.f32.mrf.mxu0
      %v850 = vadd.f32 0.0, %v849
      %v851 = vpop.f32.mrf.mxu0
      %852 = vmatprep.mubr.f32.mxu0 0.0
      %853 = vmatmul.mubr.f32.gmra.mxu0 %v682
      %v854 = vpop.f32.mrf.mxu0
      %v855 = vadd.f32 0.0, %v854
      %v856 = vpop.f32.mrf.mxu0
      %857 = vmatprep.mubr.f32.mxu0 0.0
      %858 = vmatmul.mubr.f32.gmra.mxu0 %v684
      %v859 = vpop.f32.mrf.mxu0
      %v860 = vadd.f32 0.0, %v859
      %v861 = vpop.f32.mrf.mxu0
      %862 = vmatprep.mubr.f32.mxu0 0.0
      %863 = vmatmul.mubr.f32.gmra.mxu0 %v686
      %v864 = vpop.f32.mrf.mxu0
      %v865 = vadd.f32 0.0, %v864
      %v866 = vpop.f32.mrf.mxu0
      %867 = vmatprep.mubr.f32.mxu0 0.0
      %868 = vmatmul.mubr.f32.gmra.mxu0 %v688
      %v869 = vpop.f32.mrf.mxu0
      %v870 = vadd.f32 0.0, %v869
      %v871 = vpop.f32.mrf.mxu0
      %872 = vmatprep.mubr.f32.mxu0 0.0
      %873 = vmatmul.mubr.f32.gmra.mxu0 %v690
      %v874 = vpop.f32.mrf.mxu0
      %v875 = vadd.f32 0.0, %v874
      %v876 = vpop.f32.mrf.mxu0
      %877 = vmatprep.mubr.f32.mxu0 0.0
      %878 = vmatmul.mubr.f32.gmra.mxu0 %v692
      %v879 = vpop.f32.mrf.mxu0
      %v880 = vadd.f32 0.0, %v879
      %v881 = vpop.f32.mrf.mxu0
      %882 = vmatprep.mubr.f32.mxu0 0.0
      %883 = vmatmul.mubr.f32.gmra.mxu0 %v694
      %v884 = vpop.f32.mrf.mxu0
      %v885 = vadd.f32 0.0, %v884
      %v886 = vpop.f32.mrf.mxu0
      %887 = vdwg.mxu0
      %v888 = vrcp.pop %v696
      %v889 = vmul.f32 1.0, %v888
      %v890 = vrcp.pop %v698
      %v891 = vmul.f32 1.0, %v890
      %v892 = vrcp.pop %v700
      %v893 = vmul.f32 1.0, %v892
      %v894 = vrcp.pop %v702
      %v895 = vmul.f32 1.0, %v894
      %v896 = vrcp.pop %v704
      %v897 = vmul.f32 1.0, %v896
      %v898 = vrcp.pop %v706
      %v899 = vmul.f32 1.0, %v898
      %v900 = vrcp.pop %v708
      %v901 = vmul.f32 1.0, %v900
      %v902 = vrcp.pop %v710
      %v903 = vmul.f32 1.0, %v902
      %v904 = vrcp.pop %v712
      %v905 = vmul.f32 1.0, %v904
      %v906 = vrcp.pop %v714
      %v907 = vmul.f32 1.0, %v906
      %v908 = vrcp.pop %v716
      %v909 = vmul.f32 1.0, %v908
      %v910 = vrcp.pop %v718
      %v911 = vmul.f32 1.0, %v910
      %v912 = vrcp.pop %v720
      %v913 = vmul.f32 1.0, %v912
      %v914 = vrcp.pop %v722
      %v915 = vmul.f32 1.0, %v914
      %v916 = vrcp.pop %v724
      %v917 = vmul.f32 1.0, %v916
      %v918 = vrcp.pop %v726
      %v919 = vmul.f32 1.0, %v918
      %v920 = vmul.f32 %v810, %v889
      %v921 = vmul.f32 %v815, %v891
      %v922 = vmul.f32 %v820, %v893
      %v923 = vmul.f32 %v825, %v895
      %v924 = vmul.f32 %v830, %v897
      %v925 = vmul.f32 %v835, %v899
      %v926 = vmul.f32 %v840, %v901
      %v927 = vmul.f32 %v845, %v903
      %v928 = vmul.f32 %v850, %v905
      %v929 = vmul.f32 %v855, %v907
      %v930 = vmul.f32 %v860, %v909
      %v931 = vmul.f32 %v865, %v911
      %v932 = vmul.f32 %v870, %v913
      %v933 = vmul.f32 %v875, %v915
      %v934 = vmul.f32 %v880, %v917
      %v935 = vmul.f32 %v885, %v919
      %936 = vxpose.xlu0.b32.start [1/16] %v920, 128
      %937 = vxpose.xlu0.b32.cont [2/16] %v921, 128
      %938 = vxpose.xlu0.b32.cont [3/16] %v922, 128
      %939 = vxpose.xlu0.b32.cont [4/16] %v923, 128
      %940 = vxpose.xlu0.b32.cont [5/16] %v924, 128
      %941 = vxpose.xlu0.b32.cont [6/16] %v925, 128
      %942 = vxpose.xlu0.b32.cont [7/16] %v926, 128
      %943 = vxpose.xlu0.b32.cont [8/16] %v927, 128
      %944 = vxpose.xlu0.b32.cont [9/16] %v928, 128
      %945 = vxpose.xlu0.b32.cont [10/16] %v929, 128
      %946 = vxpose.xlu0.b32.cont [11/16] %v930, 128
      %947 = vxpose.xlu0.b32.cont [12/16] %v931, 128
      %948 = vxpose.xlu0.b32.cont [13/16] %v932, 128
      %949 = vxpose.xlu0.b32.cont [14/16] %v933, 128
      %950 = vxpose.xlu0.b32.cont [15/16] %v934, 128
      %951 = vxpose.xlu0.b32.end [16/16] %v935, 128
      %v952 = vpop.trf.xlu0
      %v953 = vpop.trf.xlu0
      %v954 = vpop.trf.xlu0
      %v955 = vpop.trf.xlu0
      %v956 = vpop.trf.xlu0
      %v957 = vpop.trf.xlu0
      %v958 = vpop.trf.xlu0
      %v959 = vpop.trf.xlu0
      %v960 = vpop.trf.xlu0
      %v961 = vpop.trf.xlu0
      %v962 = vpop.trf.xlu0
      %v963 = vpop.trf.xlu0
      %v964 = vpop.trf.xlu0
      %v965 = vpop.trf.xlu0
      %v966 = vpop.trf.xlu0
      %v967 = vpop.trf.xlu0
      %968 = vst [vmem:[%s244] sm:$0xff] %v952
      %969 = vst [vmem:[%s244 + $0x8] sm:$0xff] %v953
      %970 = vst [vmem:[%s244 + $0x10] sm:$0xff] %v954
      %971 = vst [vmem:[%s244 + $0x18] sm:$0xff] %v955
      %972 = vst [vmem:[%s244 + $0x20] sm:$0xff] %v956
      %973 = vst [vmem:[%s244 + $0x28] sm:$0xff] %v957
      %974 = vst [vmem:[%s244 + $0x30] sm:$0xff] %v958
      %975 = vst [vmem:[%s244 + $0x38] sm:$0xff] %v959
      %976 = vst [vmem:[%s244 + $0x40] sm:$0xff] %v960
      %977 = vst [vmem:[%s244 + $0x48] sm:$0xff] %v961
      %978 = vst [vmem:[%s244 + $0x50] sm:$0xff] %v962
      %979 = vst [vmem:[%s244 + $0x58] sm:$0xff] %v963
      %980 = vst [vmem:[%s244 + $0x60] sm:$0xff] %v964
      %981 = vst [vmem:[%s244 + $0x68] sm:$0xff] %v965
      %982 = vst [vmem:[%s244 + $0x70] sm:$0xff] %v966
      %983 = vst [vmem:[%s244 + $0x78] sm:$0xff] %v967
      %p984 = scmp.lt.s32.totalorder %s20, 1
      %s985 = scalar_select %p984, %s20, 1
      %p986 = scmp.lt.s32.totalorder %s21, 0
      %s987 = scalar_select %p986, %s21, 0
      %s988 = smul.addr %s985, 16
      %s989 = sadd.s32 %s987, %s988
      %s990 = smul.addr %s989, 8
      %s991 = scalar_lea.vmem %s5, %s990
      // Predicated region
      $region41: #{psa_attention_generation.3} parent=39 // pred_check
        %p992 = pneg %p158
      $region42: #{psa_attention_generation.3} parent=39 // pred_check_branch
        %994 = sbr.rel (%p992) target = $region44
      $region43: #{psa_attention_generation.3} parent=39 // pred_region
        _
      $region44: #{psa_attention_generation.3} parent=39 // pred_fallthru
        _
    $region40: #{psa_attention_generation.3} parent=5 // pred_fallthru
      _
    %p995 = scmp.le.s32.totalorder 2, %s11
    // Predicated region
    $region45: #{psa_attention_generation.3} parent=5 // pred_check
      %p996 = pneg %p995
    $region46: #{psa_attention_generation.3} parent=5 // pred_check_branch
      %998 = sbr.rel (%p996) target = $region48
    $region47: #{psa_attention_generation.3} parent=5 // pred_region
      %s999 = ssub.s32 %s11, 2
      // Predicated region
      $region49: #{psa_attention_generation.3} parent=47 // pred_check
        %p1000 = pneg %p164
      $region50: #{psa_attention_generation.3} parent=47 // pred_check_branch
        %1002 = sbr.rel (%p1000) target = $region52
      $region51: #{psa_attention_generation.3} parent=47 // pred_region
        %p1003 = scmp.lt.s32.totalorder %s22, 1
        %s1004 = scalar_select %p1003, %s22, 1
        %p1005 = scmp.lt.s32.totalorder %s23, 0
        %s1006 = scalar_select %p1005, %s23, 0
        %s1007 = smul.addr %s1004, 16
        %s1008 = sadd.s32 %s1006, %s1007
        %s1009 = smul.addr %s1008, 8
        %s1010 = scalar_lea.vmem %s5, %s1009
      $region52: #{psa_attention_generation.3} parent=47 // pred_fallthru
        _
    $region48: #{psa_attention_generation.3} parent=5 // pred_fallthru
      _
  $region6: #{psa_attention_generation.3} parent=0 // loop_footer
    %s15 = sadd.s32 1, %s11
  $region7: #{psa_attention_generation.3} parent=0 // loop_footer_branch
    %10 = sbr.rel target = $region3
  $region8: #{psa_attention_generation.3} parent=0 // loop_exit
    _

</llo_original>
